<compile_context>
chip_gen: v5e
topology: v5e:2x2
jax: 0.10.0
libtpu: 0.0.40
codegen_flags: <defaults>
</compile_context>

<pallas_src>
import jax
import jax.numpy as jnp
from jax.experimental import pallas as pl
from jax.experimental.pallas import tpu as pltpu

NEG_SLOPE = 0.01          # PyTorch nn.LeakyReLU default negative_slope
LANE = 128
SUBLANE = 8


def _leaky_relu(x):
    return jnp.where(x >= 0, x, NEG_SLOPE * x)


def gfup_kernel(x_ref,
                w1_ref, b1_ref,          # encoder: num_genes -> H1   (streamed)
                w2_ref, b2_ref,          # encoder: H1 -> H2          (resident)
                wa_ref, ba_ref,          # attention: H2 -> H2        (resident)
                wd_ref, bd_ref,          # decoder: H2 -> H1          (resident)
                wg_ref, bg_ref,          # decoder: H1 -> num_genes   (streamed)
                wc_ref, bc_ref,          # classifier: H2 -> C_pad    (resident)
                logits_ref, genef_ref, attn_ref,
                acc_ref, d1_ref):
    p = pl.program_id(0)                 # 0 = encode/reduce phase, 1 = gene-decode phase
    k = pl.program_id(1)                 # gene-tile index
    last_k = pl.num_programs(1) - 1

    # ---------- phase 0: accumulate h1_pre = x @ w1 over streamed gene tiles ----------
    @pl.when((p == 0) & (k == 0))
    def _init():
        acc_ref[...] = jnp.zeros_like(acc_ref)

    @pl.when(p == 0)
    def _accumulate():
        x_t = x_ref[...].astype(jnp.bfloat16)
        acc_ref[...] += jnp.dot(x_t, w1_ref[...],
                                preferred_element_type=jnp.float32)

    # ---------- phase 0 finalize: bottleneck, attention, classifier ----------
    @pl.when((p == 0) & (k == last_k))
    def _bottleneck():
        h1 = _leaky_relu(acc_ref[...] + b1_ref[...])
        h1_bf = h1.astype(jnp.bfloat16)

        h2 = _leaky_relu(
            jnp.dot(h1_bf, w2_ref[...],
                    preferred_element_type=jnp.float32) + b2_ref[...])
        h2_bf = h2.astype(jnp.bfloat16)

        a_logits = (jnp.dot(h2_bf, wa_ref[...],
                            preferred_element_type=jnp.float32) + ba_ref[...])
        a_max = jnp.max(a_logits, axis=-1, keepdims=True)
        a_exp = jnp.exp(a_logits - a_max)                    # EUP
        a_sum = jnp.sum(a_exp, axis=-1, keepdims=True)       # XLU
        attn = a_exp * pl.reciprocal(a_sum, approx=True)     # EUP vrcp (free slot)
        attended = h2 * attn
        attended_bf = attended.astype(jnp.bfloat16)

        d1 = _leaky_relu(
            jnp.dot(attended_bf, wd_ref[...],
                    preferred_element_type=jnp.float32) + bd_ref[...]) + h1
        d1_ref[...] = d1.astype(jnp.bfloat16)                # persists into phase 1

        logits_ref[...] = (jnp.dot(attended_bf, wc_ref[...],
                                   preferred_element_type=jnp.float32)
                           + bc_ref[...])
        attn_ref[...] = attn

    # ---------- phase 1: stream wg tiles and decode gene_features ----------
    @pl.when(p == 1)
    def _decode():
        genef_ref[...] = (jnp.dot(d1_ref[...], wg_ref[...],
                                  preferred_element_type=jnp.float32)
                          + bg_ref[...])


def _pick_gene_tile(gene_tile, G, Bp, H1):
    """Lane-aligned gene tile that keeps the double-buffered streaming slabs
    inside a conservative, cross-chip VMEM budget (v7x physical = 64 MiB)."""
    tg = max(LANE, min((gene_tile // LANE) * LANE, pl.cdiv(G, LANE) * LANE))

    def streamed_bytes(t):
        return 2 * (Bp * t * 4 +                 # x tile (f32)
                    t * H1 * 2 + H1 * t * 2 +    # w1 / wg tiles (bf16)
                    SUBLANE * t * 4 +            # bg tile (f32, sublane-padded)
                    Bp * t * 4)                  # gene_features tile (f32)

    budget = 40 << 20
    while tg > LANE and streamed_bytes(tg) > budget:
        tg = max(LANE, (tg // 2 // LANE) * LANE)
    return tg


def gene_flow_unet_predictor(x, params, num_cell_types, *, gene_tile=2048):
    """x: (B, num_genes) f32. Returns (logits, gene_features, attentions)."""
    B, G = x.shape
    H1 = params["w1"].shape[1]
    H2 = params["w2"].shape[1]
    Cp = params["wc"].shape[1]          # classifier width already lane-padded

    # ---- pad batch to a sublane multiple, genes to the tile size ----
    Bp = max(SUBLANE, pl.cdiv(B, SUBLANE) * SUBLANE)
    tg = _pick_gene_tile(gene_tile, G, Bp, H1)
    Gp = pl.cdiv(G, tg) * tg
    T = Gp // tg
    last = T - 1

    xp = x
    if Bp != B or Gp != G:
        xp = jnp.pad(x, ((0, Bp - B), (0, Gp - G)))
    w1, wg, bg = params["w1"], params["wg"], params["bg"]
    if Gp != G:
        w1 = jnp.pad(w1, ((0, Gp - G), (0, 0)))
        wg = jnp.pad(wg, ((0, 0), (0, Gp - G)))
        bg = jnp.pad(bg, ((0, 0), (0, Gp - G)))

    # Phase-aware index maps so each streamed weight slab is DMA'd exactly once:
    #   encoder stream (x, w1): walk in phase 0, park on the last tile in phase 1.
    #   decoder stream (wg, bg, gene_features): park on tile 0, walk in phase 1.
    def enc_idx(p, k):
        return k * (1 - p) + last * p

    def dec_idx(p, k):
        return k * p

    # ---- VMEM budget (portable across 16/32/64 MiB scoped defaults) ----
    bytes_streamed = 2 * (                      # double-buffered pipeline slabs
        Bp * tg * 4 +                           # x tile (f32)
        tg * H1 * 2 + H1 * tg * 2 +             # w1 / wg tiles (bf16)
        SUBLANE * tg * 4 +                      # bg tile (f32)
        Bp * tg * 4)                            # gene_features tile (f32)
    bytes_resident = (
        (H1 * H2 + H2 * H2 + H2 * H1 + H2 * Cp) * 2 +    # small weights (bf16)
        SUBLANE * (2 * H1 + 2 * H2 + Cp) * 4 +           # biases (f32)
        Bp * (Cp + H2) * 4 +                             # logits / attn outputs
        Bp * H1 * 4 + Bp * H1 * 2)                       # scratch: acc (f32), d1 (bf16)
    vmem_limit = int(min(bytes_streamed + bytes_resident + (8 << 20), 48 << 20))

    flops = 2 * Bp * (Gp * H1 + H1 * H2 + H2 * H2 + H2 * H1 + H1 * Gp + H2 * Cp)
    bytes_accessed = int(
        Bp * Gp * 4 + Gp * H1 * 2 + H1 * Gp * 2 +
        (H1 * H2 + H2 * H2 + H2 * H1 + H2 * Cp) * 2 +
        (2 * H1 + 2 * H2 + Cp + Gp) * 4 +
        Bp * (Cp + Gp + H2) * 4)
    cost = pl.CostEstimate(flops=flops, transcendentals=Bp * H2,
                           bytes_accessed=bytes_accessed)

    grid_spec = pltpu.PrefetchScalarGridSpec(
        num_scalar_prefetch=0,
        grid=(2, T),
        in_specs=[
            pl.BlockSpec((Bp, tg), lambda p, k: (0, enc_idx(p, k))),   # x
            pl.BlockSpec((tg, H1), lambda p, k: (enc_idx(p, k), 0)),   # w1
            pl.BlockSpec((1, H1),  lambda p, k: (0, 0)),               # b1
            pl.BlockSpec((H1, H2), lambda p, k: (0, 0)),               # w2
            pl.BlockSpec((1, H2),  lambda p, k: (0, 0)),               # b2
            pl.BlockSpec((H2, H2), lambda p, k: (0, 0)),               # wa
            pl.BlockSpec((1, H2),  lambda p, k: (0, 0)),               # ba
            pl.BlockSpec((H2, H1), lambda p, k: (0, 0)),               # wd
            pl.BlockSpec((1, H1),  lambda p, k: (0, 0)),               # bd
            pl.BlockSpec((H1, tg), lambda p, k: (0, dec_idx(p, k))),   # wg
            pl.BlockSpec((1, tg),  lambda p, k: (0, dec_idx(p, k))),   # bg
            pl.BlockSpec((H2, Cp), lambda p, k: (0, 0)),               # wc
            pl.BlockSpec((1, Cp),  lambda p, k: (0, 0)),               # bc
        ],
        out_specs=(
            pl.BlockSpec((Bp, Cp), lambda p, k: (0, 0)),               # logits (padded)
            pl.BlockSpec((Bp, tg), lambda p, k: (0, dec_idx(p, k))),   # gene_features
            pl.BlockSpec((Bp, H2), lambda p, k: (0, 0)),               # attentions
        ),
        scratch_shapes=[
            pltpu.VMEM((Bp, H1), jnp.float32),    # h1 pre-activation accumulator
            pltpu.VMEM((Bp, H1), jnp.bfloat16),   # d1 (decoder hidden + skip), MXU-ready
        ],
    )

    logits_p, genef_p, attn_p = pl.pallas_call(
        gfup_kernel,
        out_shape=(
            jax.ShapeDtypeStruct((Bp, Cp), jnp.float32),
            jax.ShapeDtypeStruct((Bp, Gp), jnp.float32),
            jax.ShapeDtypeStruct((Bp, H2), jnp.float32),
        ),
        grid_spec=grid_spec,
        compiler_params=pltpu.CompilerParams(
            dimension_semantics=("arbitrary", "arbitrary"),
            vmem_limit_bytes=vmem_limit),
        cost_estimate=cost,
    )(xp,
      w1, params["b1"],
      params["w2"], params["b2"],
      params["wa"], params["ba"],
      params["wd"], params["bd"],
      wg, bg,
      params["wc"], params["bc"])

    return (logits_p[:B, :num_cell_types],
            genef_p[:B, :G],
            attn_p[:B, :])


def init_params(key, num_genes, num_cell_types, hidden_dims=(512, 256)):
    """Weights stored bf16 (halved HBM streaming traffic); biases f32.
    The classifier is padded to a lane-dense width (128)."""
    H1, H2 = hidden_dims
    ks = jax.random.split(key, 6)
    scale = 0.02
    c_pad = max(LANE, pl.cdiv(num_cell_types, LANE) * LANE)

    def lin(k, fan_in, fan_out, pad_out=None):
        w = scale * jax.random.normal(k, (fan_in, fan_out), dtype=jnp.float32)
        b = jnp.zeros((1, fan_out), dtype=jnp.float32)
        if pad_out is not None and pad_out > fan_out:
            w = jnp.pad(w, ((0, 0), (0, pad_out - fan_out)))
            b = jnp.pad(b, ((0, 0), (0, pad_out - fan_out)))
        return w.astype(jnp.bfloat16), b

    w1, b1 = lin(ks[0], num_genes, H1)
    w2, b2 = lin(ks[1], H1, H2)
    wa, ba = lin(ks[2], H2, H2)
    wd, bd = lin(ks[3], H2, H1)
    wg, bg = lin(ks[4], H1, num_genes)
    wc, bc = lin(ks[5], H2, num_cell_types, pad_out=c_pad)
    return dict(w1=w1, b1=b1, w2=w2, b2=b2, wa=wa, ba=ba,
                wd=wd, bd=bd, wg=wg, bg=bg, wc=wc, bc=bc)


def _reference(x, params, num_cell_types):
    """Pure-JAX reference in the same mixed precision as the kernel."""
    def mm(a, w):
        return jnp.dot(a.astype(jnp.bfloat16), w,
                       preferred_element_type=jnp.float32)
    h1 = _leaky_relu(mm(x, params["w1"]) + params["b1"])
    h2 = _leaky_relu(mm(h1, params["w2"]) + params["b2"])
    a = mm(h2, params["wa"]) + params["ba"]
    attn = jax.nn.softmax(a, axis=-1)
    attended = h2 * attn
    d1 = _leaky_relu(mm(attended, params["wd"]) + params["bd"]) + h1
    gene_features = mm(d1, params["wg"]) + params["bg"]
    logits = (mm(attended, params["wc"]) + params["bc"])[:, :num_cell_types]
    return logits, gene_features, attn


if __name__ == "__main__":
    key = jax.random.PRNGKey(0)
    k_param, k_x = jax.random.split(key)

    batch = 8
    num_genes = 256
    num_cell_types = 16

    params = init_params(k_param, num_genes, num_cell_types, hidden_dims=(512, 256))
    x = jax.random.normal(k_x, (batch, num_genes), dtype=jnp.float32)

    # gene_tile=128 -> two gene tiles, exercising the streamed/pipelined path.
    logits, gene_features, attentions = gene_flow_unet_predictor(
        x, params, num_cell_types, gene_tile=128)
    jax.block_until_ready((logits, gene_features, attentions))

    assert logits.shape == (batch, num_cell_types)
    assert gene_features.shape == (batch, num_genes)
    assert attentions.shape == (batch, 256)

    ref_logits, ref_genef, ref_attn = _reference(x, params, num_cell_types)
    assert bool(jnp.allclose(logits, ref_logits, rtol=2e-2, atol=2e-2))
    assert bool(jnp.allclose(gene_features, ref_genef, rtol=2e-2, atol=2e-2))
    assert bool(jnp.allclose(attentions, ref_attn, rtol=2e-2, atol=2e-2))

    print("KERNEL_OK")
</pallas_src>

<mosaic_0001>
module attributes {stable_mosaic.version = 11 : i64} {
  func.func @gfup_kernel(%arg0: i32, %arg1: i32, %arg2: memref<8x128xf32, #tpu.memory_space<vmem>>, %arg3: memref<128x512xbf16, #tpu.memory_space<vmem>>, %arg4: memref<1x512xf32, #tpu.memory_space<vmem>>, %arg5: memref<512x256xbf16, #tpu.memory_space<vmem>>, %arg6: memref<1x256xf32, #tpu.memory_space<vmem>>, %arg7: memref<256x256xbf16, #tpu.memory_space<vmem>>, %arg8: memref<1x256xf32, #tpu.memory_space<vmem>>, %arg9: memref<256x512xbf16, #tpu.memory_space<vmem>>, %arg10: memref<1x512xf32, #tpu.memory_space<vmem>>, %arg11: memref<512x128xbf16, #tpu.memory_space<vmem>>, %arg12: memref<1x128xf32, #tpu.memory_space<vmem>>, %arg13: memref<256x128xbf16, #tpu.memory_space<vmem>>, %arg14: memref<1x128xf32, #tpu.memory_space<vmem>>, %arg15: memref<8x128xf32, #tpu.memory_space<vmem>>, %arg16: memref<8x128xf32, #tpu.memory_space<vmem>>, %arg17: memref<8x256xf32, #tpu.memory_space<vmem>>, %arg18: memref<8x512xf32, #tpu.memory_space<vmem>>, %arg19: memref<8x512xbf16, #tpu.memory_space<vmem>>) attributes {dimension_semantics = [#tpu.dimension_semantics<arbitrary>, #tpu.dimension_semantics<arbitrary>], iteration_bounds = array<i64: 2, 2>, scalar_prefetch = 0 : i64, scratch_operands = 2 : i64, tpu.core_type = #tpu.core_type<tc>, window_params = [{transform_indices = @transform_0, window_bounds = array<i64: 8, 128>}, {transform_indices = @transform_1, window_bounds = array<i64: 128, 512>}, {pipeline_mode = #tpu.pipeline_mode<synchronous>, transform_indices = @transform_2, window_bounds = array<i64: 1, 512>}, {pipeline_mode = #tpu.pipeline_mode<synchronous>, transform_indices = @transform_3, window_bounds = array<i64: 512, 256>}, {pipeline_mode = #tpu.pipeline_mode<synchronous>, transform_indices = @transform_4, window_bounds = array<i64: 1, 256>}, {pipeline_mode = #tpu.pipeline_mode<synchronous>, transform_indices = @transform_5, window_bounds = array<i64: 256, 256>}, {pipeline_mode = #tpu.pipeline_mode<synchronous>, transform_indices = @transform_6, window_bounds = array<i64: 1, 256>}, {pipeline_mode = #tpu.pipeline_mode<synchronous>, transform_indices = @transform_7, window_bounds = array<i64: 256, 512>}, {pipeline_mode = #tpu.pipeline_mode<synchronous>, transform_indices = @transform_8, window_bounds = array<i64: 1, 512>}, {transform_indices = @transform_9, window_bounds = array<i64: 512, 128>}, {transform_indices = @transform_10, window_bounds = array<i64: 1, 128>}, {pipeline_mode = #tpu.pipeline_mode<synchronous>, transform_indices = @transform_11, window_bounds = array<i64: 256, 128>}, {pipeline_mode = #tpu.pipeline_mode<synchronous>, transform_indices = @transform_12, window_bounds = array<i64: 1, 128>}, {pipeline_mode = #tpu.pipeline_mode<synchronous>, transform_indices = @transform_13, window_bounds = array<i64: 8, 128>}, {transform_indices = @transform_14, window_bounds = array<i64: 8, 128>}, {pipeline_mode = #tpu.pipeline_mode<synchronous>, transform_indices = @transform_15, window_bounds = array<i64: 8, 256>}]} {
    %c0_i32 = arith.constant 0 : i32
    %0 = arith.cmpi eq, %arg0, %c0_i32 : i32
    %c0_i32_0 = arith.constant 0 : i32
    %1 = arith.cmpi eq, %arg1, %c0_i32_0 : i32
    %2 = arith.andi %0, %1 : i1
    %3 = arith.extui %2 : i1 to i32
    %c0_i32_1 = arith.constant 0 : i32
    %4 = arith.cmpi ne, %3, %c0_i32_1 : i32
    scf.if %4 {
      %cst = arith.constant 0.000000e+00 : f32
      %16 = vector.broadcast %cst : f32 to vector<8x512xf32>
      %c0 = arith.constant 0 : index
      %c0_8 = arith.constant 0 : index
      %17 = vector.load %arg18[%c0, %c0_8] : memref<8x512xf32, #tpu.memory_space<vmem>>, vector<8x512xf32>
      tpu.vector_store %arg18[%c0, %c0_8], %16 {strides = array<i32>} : memref<8x512xf32, #tpu.memory_space<vmem>>, vector<8x512xf32>,
    } else {
    }
    %c0_i32_2 = arith.constant 0 : i32
    %5 = arith.cmpi eq, %arg0, %c0_i32_2 : i32
    %6 = arith.extui %5 : i1 to i32
    %c0_i32_3 = arith.constant 0 : i32
    %7 = arith.cmpi ne, %6, %c0_i32_3 : i32
    scf.if %7 {
      %c0 = arith.constant 0 : index
      %c0_8 = arith.constant 0 : index
      %16 = vector.load %arg2[%c0, %c0_8] : memref<8x128xf32, #tpu.memory_space<vmem>>, vector<8x128xf32>
      %17 = arith.truncf %16 : vector<8x128xf32> to vector<8x128xbf16>
      %c0_9 = arith.constant 0 : index
      %c0_10 = arith.constant 0 : index
      %18 = vector.load %arg18[%c0_9, %c0_10] : memref<8x512xf32, #tpu.memory_space<vmem>>, vector<8x512xf32>
      %c0_11 = arith.constant 0 : index
      %c0_12 = arith.constant 0 : index
      %19 = vector.load %arg3[%c0_11, %c0_12] : memref<128x512xbf16, #tpu.memory_space<vmem>>, vector<128x512xbf16>
      %cst = arith.constant dense<0.000000e+00> : vector<8x512xf32>
      %20 = tpu.matmul %17, %19, %cst {dimension_numbers = #tpu.dot_dimension_numbers<[1], [0], [0], [1], [0, 0, 1, 1], [], []>} : vector<8x128xbf16>, vector<128x512xbf16>, vector<8x512xf32> -> vector<8x512xf32>
      %21 = arith.addf %18, %20 : vector<8x512xf32>
      %c0_13 = arith.constant 0 : index
      %c0_14 = arith.constant 0 : index
      %22 = vector.load %arg18[%c0_13, %c0_14] : memref<8x512xf32, #tpu.memory_space<vmem>>, vector<8x512xf32>
      tpu.vector_store %arg18[%c0_13, %c0_14], %21 {strides = array<i32>} : memref<8x512xf32, #tpu.memory_space<vmem>>, vector<8x512xf32>,
    } else {
    }
    %c0_i32_4 = arith.constant 0 : i32
    %8 = arith.cmpi eq, %arg0, %c0_i32_4 : i32
    %c1_i32 = arith.constant 1 : i32
    %9 = arith.cmpi eq, %arg1, %c1_i32 : i32
    %10 = arith.andi %8, %9 : i1
    %11 = arith.extui %10 : i1 to i32
    %c0_i32_5 = arith.constant 0 : i32
    %12 = arith.cmpi ne, %11, %c0_i32_5 : i32
    scf.if %12 {
      %c0 = arith.constant 0 : index
      %c0_8 = arith.constant 0 : index
      %16 = vector.load %arg18[%c0, %c0_8] : memref<8x512xf32, #tpu.memory_space<vmem>>, vector<8x512xf32>
      %c0_9 = arith.constant 0 : index
      %c0_10 = arith.constant 0 : index
      %17 = vector.load %arg4[%c0_9, %c0_10] : memref<1x512xf32, #tpu.memory_space<vmem>>, vector<1x512xf32>
      %18 = vector.broadcast %17 : vector<1x512xf32> to vector<8x512xf32>
      %19 = arith.addf %16, %18 : vector<8x512xf32>
      %cst = arith.constant 0.000000e+00 : f32
      %20 = vector.broadcast %cst : f32 to vector<8x512xf32>
      %21 = arith.cmpf oge, %19, %20 : vector<8x512xf32>
      %cst_11 = arith.constant 0.00999999977 : f32
      %22 = vector.broadcast %cst_11 : f32 to vector<8x512xf32>
      %23 = arith.mulf %22, %19 : vector<8x512xf32>
      %24 = arith.select %21, %19, %23 : vector<8x512xi1>, vector<8x512xf32>
      %25 = arith.truncf %24 : vector<8x512xf32> to vector<8x512xbf16>
      %c0_12 = arith.constant 0 : index
      %c0_13 = arith.constant 0 : index
      %26 = vector.load %arg5[%c0_12, %c0_13] : memref<512x256xbf16, #tpu.memory_space<vmem>>, vector<512x256xbf16>
      %cst_14 = arith.constant dense<0.000000e+00> : vector<8x256xf32>
      %27 = tpu.matmul %25, %26, %cst_14 {dimension_numbers = #tpu.dot_dimension_numbers<[1], [0], [0], [1], [0, 0, 1, 1], [], []>} : vector<8x512xbf16>, vector<512x256xbf16>, vector<8x256xf32> -> vector<8x256xf32>
      %c0_15 = arith.constant 0 : index
      %c0_16 = arith.constant 0 : index
      %28 = vector.load %arg6[%c0_15, %c0_16] : memref<1x256xf32, #tpu.memory_space<vmem>>, vector<1x256xf32>
      %29 = vector.broadcast %28 : vector<1x256xf32> to vector<8x256xf32>
      %30 = arith.addf %27, %29 : vector<8x256xf32>
      %cst_17 = arith.constant 0.000000e+00 : f32
      %31 = vector.broadcast %cst_17 : f32 to vector<8x256xf32>
      %32 = arith.cmpf oge, %30, %31 : vector<8x256xf32>
      %cst_18 = arith.constant 0.00999999977 : f32
      %33 = vector.broadcast %cst_18 : f32 to vector<8x256xf32>
      %34 = arith.mulf %33, %30 : vector<8x256xf32>
      %35 = arith.select %32, %30, %34 : vector<8x256xi1>, vector<8x256xf32>
      %36 = arith.truncf %35 : vector<8x256xf32> to vector<8x256xbf16>
      %c0_19 = arith.constant 0 : index
      %c0_20 = arith.constant 0 : index
      %37 = vector.load %arg7[%c0_19, %c0_20] : memref<256x256xbf16, #tpu.memory_space<vmem>>, vector<256x256xbf16>
      %cst_21 = arith.constant dense<0.000000e+00> : vector<8x256xf32>
      %38 = tpu.matmul %36, %37, %cst_21 {dimension_numbers = #tpu.dot_dimension_numbers<[1], [0], [0], [1], [0, 0, 1, 1], [], []>} : vector<8x256xbf16>, vector<256x256xbf16>, vector<8x256xf32> -> vector<8x256xf32>
      %c0_22 = arith.constant 0 : index
      %c0_23 = arith.constant 0 : index
      %39 = vector.load %arg8[%c0_22, %c0_23] : memref<1x256xf32, #tpu.memory_space<vmem>>, vector<1x256xf32>
      %40 = vector.broadcast %39 : vector<1x256xf32> to vector<8x256xf32>
      %41 = arith.addf %38, %40 : vector<8x256xf32>
      %cst_24 = arith.constant dense<0xFF800000> : vector<8xf32>
      %42 = vector.multi_reduction <maximumf>, %41, %cst_24 [1] : vector<8x256xf32> to vector<8xf32>
      %43 = vector.shape_cast %42 : vector<8xf32> to vector<8x1xf32>
      %44 = vector.broadcast %43 : vector<8x1xf32> to vector<8x256xf32>
      %45 = arith.subf %41, %44 : vector<8x256xf32>
      %46 = math.exp %45 : vector<8x256xf32>
      %cst_25 = arith.constant dense<0.000000e+00> : vector<8xf32>
      %47 = vector.multi_reduction <add>, %46, %cst_25 [1] : vector<8x256xf32> to vector<8xf32>
      %48 = vector.shape_cast %47 : vector<8xf32> to vector<8x1xf32>
      %49 = tpu.reciprocal %48 {approx = true} : vector<8x1xf32> -> vector<8x1xf32>
      %50 = vector.broadcast %49 : vector<8x1xf32> to vector<8x256xf32>
      %51 = arith.mulf %46, %50 : vector<8x256xf32>
      %52 = arith.mulf %35, %51 : vector<8x256xf32>
      %53 = arith.truncf %52 : vector<8x256xf32> to vector<8x256xbf16>
      %c0_26 = arith.constant 0 : index
      %c0_27 = arith.constant 0 : index
      %54 = vector.load %arg9[%c0_26, %c0_27] : memref<256x512xbf16, #tpu.memory_space<vmem>>, vector<256x512xbf16>
      %cst_28 = arith.constant dense<0.000000e+00> : vector<8x512xf32>
      %55 = tpu.matmul %53, %54, %cst_28 {dimension_numbers = #tpu.dot_dimension_numbers<[1], [0], [0], [1], [0, 0, 1, 1], [], []>} : vector<8x256xbf16>, vector<256x512xbf16>, vector<8x512xf32> -> vector<8x512xf32>
      %c0_29 = arith.constant 0 : index
      %c0_30 = arith.constant 0 : index
      %56 = vector.load %arg10[%c0_29, %c0_30] : memref<1x512xf32, #tpu.memory_space<vmem>>, vector<1x512xf32>
      %57 = vector.broadcast %56 : vector<1x512xf32> to vector<8x512xf32>
      %58 = arith.addf %55, %57 : vector<8x512xf32>
      %cst_31 = arith.constant 0.000000e+00 : f32
      %59 = vector.broadcast %cst_31 : f32 to vector<8x512xf32>
      %60 = arith.cmpf oge, %58, %59 : vector<8x512xf32>
      %cst_32 = arith.constant 0.00999999977 : f32
      %61 = vector.broadcast %cst_32 : f32 to vector<8x512xf32>
      %62 = arith.mulf %61, %58 : vector<8x512xf32>
      %63 = arith.select %60, %58, %62 : vector<8x512xi1>, vector<8x512xf32>
      %64 = arith.addf %63, %24 : vector<8x512xf32>
      %65 = arith.truncf %64 : vector<8x512xf32> to vector<8x512xbf16>
      %c0_33 = arith.constant 0 : index
      %c0_34 = arith.constant 0 : index
      %66 = vector.load %arg19[%c0_33, %c0_34] : memref<8x512xbf16, #tpu.memory_space<vmem>>, vector<8x512xbf16>
      tpu.vector_store %arg19[%c0_33, %c0_34], %65 {strides = array<i32>} : memref<8x512xbf16, #tpu.memory_space<vmem>>, vector<8x512xbf16>,
      %c0_35 = arith.constant 0 : index
      %c0_36 = arith.constant 0 : index
      %67 = vector.load %arg13[%c0_35, %c0_36] : memref<256x128xbf16, #tpu.memory_space<vmem>>, vector<256x128xbf16>
      %cst_37 = arith.constant dense<0.000000e+00> : vector<8x128xf32>
      %68 = tpu.matmul %53, %67, %cst_37 {dimension_numbers = #tpu.dot_dimension_numbers<[1], [0], [0], [1], [0, 0, 1, 1], [], []>} : vector<8x256xbf16>, vector<256x128xbf16>, vector<8x128xf32> -> vector<8x128xf32>
      %c0_38 = arith.constant 0 : index
      %c0_39 = arith.constant 0 : index
      %69 = vector.load %arg14[%c0_38, %c0_39] : memref<1x128xf32, #tpu.memory_space<vmem>>, vector<1x128xf32>
      %70 = vector.broadcast %69 : vector<1x128xf32> to vector<8x128xf32>
      %71 = arith.addf %68, %70 : vector<8x128xf32>
      %c0_40 = arith.constant 0 : index
      %c0_41 = arith.constant 0 : index
      %72 = vector.load %arg15[%c0_40, %c0_41] : memref<8x128xf32, #tpu.memory_space<vmem>>, vector<8x128xf32>
      tpu.vector_store %arg15[%c0_40, %c0_41], %71 {strides = array<i32>} : memref<8x128xf32, #tpu.memory_space<vmem>>, vector<8x128xf32>,
      %c0_42 = arith.constant 0 : index
      %c0_43 = arith.constant 0 : index
      %73 = vector.load %arg17[%c0_42, %c0_43] : memref<8x256xf32, #tpu.memory_space<vmem>>, vector<8x256xf32>
      tpu.vector_store %arg17[%c0_42, %c0_43], %51 {strides = array<i32>} : memref<8x256xf32, #tpu.memory_space<vmem>>, vector<8x256xf32>,
    } else {
    }
    %c1_i32_6 = arith.constant 1 : i32
    %13 = arith.cmpi eq, %arg0, %c1_i32_6 : i32
    %14 = arith.extui %13 : i1 to i32
    %c0_i32_7 = arith.constant 0 : i32
    %15 = arith.cmpi ne, %14, %c0_i32_7 : i32
    scf.if %15 {
      %c0 = arith.constant 0 : index
      %c0_8 = arith.constant 0 : index
      %16 = vector.load %arg19[%c0, %c0_8] : memref<8x512xbf16, #tpu.memory_space<vmem>>, vector<8x512xbf16>
      %c0_9 = arith.constant 0 : index
      %c0_10 = arith.constant 0 : index
      %17 = vector.load %arg11[%c0_9, %c0_10] : memref<512x128xbf16, #tpu.memory_space<vmem>>, vector<512x128xbf16>
      %cst = arith.constant dense<0.000000e+00> : vector<8x128xf32>
      %18 = tpu.matmul %16, %17, %cst {dimension_numbers = #tpu.dot_dimension_numbers<[1], [0], [0], [1], [0, 0, 1, 1], [], []>} : vector<8x512xbf16>, vector<512x128xbf16>, vector<8x128xf32> -> vector<8x128xf32>
      %c0_11 = arith.constant 0 : index
      %c0_12 = arith.constant 0 : index
      %19 = vector.load %arg12[%c0_11, %c0_12] : memref<1x128xf32, #tpu.memory_space<vmem>>, vector<1x128xf32>
      %20 = vector.broadcast %19 : vector<1x128xf32> to vector<8x128xf32>
      %21 = arith.addf %18, %20 : vector<8x128xf32>
      %c0_13 = arith.constant 0 : index
      %c0_14 = arith.constant 0 : index
      %22 = vector.load %arg16[%c0_13, %c0_14] : memref<8x128xf32, #tpu.memory_space<vmem>>, vector<8x128xf32>
      tpu.vector_store %arg16[%c0_13, %c0_14], %21 {strides = array<i32>} : memref<8x128xf32, #tpu.memory_space<vmem>>, vector<8x128xf32>,
    } else {
    }
    return
  }
  func.func @transform_0(%arg0: i32, %arg1: i32) -> (i32, i32) {
    %c1_i32 = arith.constant 1 : i32
    %0 = arith.subi %c1_i32, %arg0 : i32
    %1 = arith.muli %arg1, %0 : i32
    %c1_i32_0 = arith.constant 1 : i32
    %2 = arith.muli %c1_i32_0, %arg0 : i32
    %3 = arith.addi %1, %2 : i32
    %c0_i32 = arith.constant 0 : i32
    %c0_i32_1 = arith.constant 0 : i32
    return %c0_i32, %3 : i32, i32
  }
  func.func @transform_1(%arg0: i32, %arg1: i32) -> (i32, i32) {
    %c1_i32 = arith.constant 1 : i32
    %0 = arith.subi %c1_i32, %arg0 : i32
    %1 = arith.muli %arg1, %0 : i32
    %c1_i32_0 = arith.constant 1 : i32
    %2 = arith.muli %c1_i32_0, %arg0 : i32
    %3 = arith.addi %1, %2 : i32
    %c0_i32 = arith.constant 0 : i32
    %c0_i32_1 = arith.constant 0 : i32
    return %3, %c0_i32 : i32, i32
  }
  func.func @transform_2(%arg0: i32, %arg1: i32) -> (i32, i32) {
    %c0_i32 = arith.constant 0 : i32
    %c0_i32_0 = arith.constant 0 : i32
    %c0_i32_1 = arith.constant 0 : i32
    return %c0_i32, %c0_i32_0 : i32, i32
  }
  func.func @transform_3(%arg0: i32, %arg1: i32) -> (i32, i32) {
    %c0_i32 = arith.constant 0 : i32
    %c0_i32_0 = arith.constant 0 : i32
    %c0_i32_1 = arith.constant 0 : i32
    return %c0_i32, %c0_i32_0 : i32, i32
  }
  func.func @transform_4(%arg0: i32, %arg1: i32) -> (i32, i32) {
    %c0_i32 = arith.constant 0 : i32
    %c0_i32_0 = arith.constant 0 : i32
    %c0_i32_1 = arith.constant 0 : i32
    return %c0_i32, %c0_i32_0 : i32, i32
  }
  func.func @transform_5(%arg0: i32, %arg1: i32) -> (i32, i32) {
    %c0_i32 = arith.constant 0 : i32
    %c0_i32_0 = arith.constant 0 : i32
    %c0_i32_1 = arith.constant 0 : i32
    return %c0_i32, %c0_i32_0 : i32, i32
  }
  func.func @transform_6(%arg0: i32, %arg1: i32) -> (i32, i32) {
    %c0_i32 = arith.constant 0 : i32
    %c0_i32_0 = arith.constant 0 : i32
    %c0_i32_1 = arith.constant 0 : i32
    return %c0_i32, %c0_i32_0 : i32, i32
  }
  func.func @transform_7(%arg0: i32, %arg1: i32) -> (i32, i32) {
    %c0_i32 = arith.constant 0 : i32
    %c0_i32_0 = arith.constant 0 : i32
    %c0_i32_1 = arith.constant 0 : i32
    return %c0_i32, %c0_i32_0 : i32, i32
  }
  func.func @transform_8(%arg0: i32, %arg1: i32) -> (i32, i32) {
    %c0_i32 = arith.constant 0 : i32
    %c0_i32_0 = arith.constant 0 : i32
    %c0_i32_1 = arith.constant 0 : i32
    return %c0_i32, %c0_i32_0 : i32, i32
  }
  func.func @transform_9(%arg0: i32, %arg1: i32) -> (i32, i32) {
    %0 = arith.muli %arg1, %arg0 : i32
    %c0_i32 = arith.constant 0 : i32
    %c0_i32_0 = arith.constant 0 : i32
    return %c0_i32, %0 : i32, i32
  }
  func.func @transform_10(%arg0: i32, %arg1: i32) -> (i32, i32) {
    %0 = arith.muli %arg1, %arg0 : i32
    %c0_i32 = arith.constant 0 : i32
    %c0_i32_0 = arith.constant 0 : i32
    return %c0_i32, %0 : i32, i32
  }
  func.func @transform_11(%arg0: i32, %arg1: i32) -> (i32, i32) {
    %c0_i32 = arith.constant 0 : i32
    %c0_i32_0 = arith.constant 0 : i32
    %c0_i32_1 = arith.constant 0 : i32
    return %c0_i32, %c0_i32_0 : i32, i32
  }
  func.func @transform_12(%arg0: i32, %arg1: i32) -> (i32, i32) {
    %c0_i32 = arith.constant 0 : i32
    %c0_i32_0 = arith.constant 0 : i32
    %c0_i32_1 = arith.constant 0 : i32
    return %c0_i32, %c0_i32_0 : i32, i32
  }
  func.func @transform_13(%arg0: i32, %arg1: i32) -> (i32, i32) {
    %c0_i32 = arith.constant 0 : i32
    %c0_i32_0 = arith.constant 0 : i32
    %c0_i32_1 = arith.constant 0 : i32
    return %c0_i32, %c0_i32_0 : i32, i32
  }
  func.func @transform_14(%arg0: i32, %arg1: i32) -> (i32, i32) {
    %0 = arith.muli %arg1, %arg0 : i32
    %c0_i32 = arith.constant 0 : i32
    %c0_i32_0 = arith.constant 0 : i32
    return %c0_i32, %0 : i32, i32
  }
  func.func @transform_15(%arg0: i32, %arg1: i32) -> (i32, i32) {
    %c0_i32 = arith.constant 0 : i32
    %c0_i32_0 = arith.constant 0 : i32
    %c0_i32_1 = arith.constant 0 : i32
    return %c0_i32, %c0_i32_0 : i32, i32
  }
}

</mosaic_0001>

<llo_original>
// kernel: tpu_custom_call.1
$region0: #{tpu_custom_call.1}
  #allocation0 [shape = 'u32[]', space=smem, size = 0x4, offset = 0x4, fixed_abs, tag = 'smem constant byte address 0x4 - core index']
  #allocation1 [shape = 'u32[72,128]{1,0:T(1,128)}', space=vmem, size = 0x9000, scoped, tag = 'internal scratch']
  #allocation2 [shape = 'f32[8,512]{1,0:T(8,128)}', space=vmem, size = 0x4000, scoped, tag = 'scratch operand']
  #allocation3 [shape = 'bf16[8,512]{1,0:T(8,128)(2,1)}', space=vmem, size = 0x2000, scoped, tag = 'scratch operand']
  %s0 = inlined_call_operand.hbm [shape: f32[8,256], index: 0, kind: input, shape index: {}]
  %s1 = inlined_call_operand.hbm [shape: bf16[256,512], index: 1, kind: input, shape index: {}]
  %s2 = inlined_call_operand.hbm [shape: f32[1,512], index: 2, kind: input, shape index: {}]
  %s3 = inlined_call_operand.hbm [shape: bf16[512,256], index: 3, kind: input, shape index: {}]
  %s4 = inlined_call_operand.vmem [shape: f32[1,256], index: 4, kind: input, shape index: {}]
  %s5 = inlined_call_operand.hbm [shape: bf16[256,256], index: 5, kind: input, shape index: {}]
  %s6 = inlined_call_operand.hbm [shape: f32[1,256], index: 6, kind: input, shape index: {}]
  %s7 = inlined_call_operand.hbm [shape: bf16[256,512], index: 7, kind: input, shape index: {}]
  %s8 = inlined_call_operand.vmem [shape: f32[1,512], index: 8, kind: input, shape index: {}]
  %s9 = inlined_call_operand.hbm [shape: bf16[512,256], index: 9, kind: input, shape index: {}]
  %s10 = inlined_call_operand.vmem [shape: f32[1,256], index: 10, kind: input, shape index: {}]
  %s11 = inlined_call_operand.hbm [shape: bf16[256,128], index: 11, kind: input, shape index: {}]
  %s12 = inlined_call_operand.vmem [shape: f32[1,128], index: 12, kind: input, shape index: {}]
  %s13 = inlined_call_operand.hbm [shape: f32[8,128], index: 13, kind: output, shape index: {0}]
  %s14 = inlined_call_operand.hbm [shape: f32[8,256], index: 14, kind: output, shape index: {1}]
  %s15 = inlined_call_operand.hbm [shape: f32[8,256], index: 15, kind: output, shape index: {2}]
  %16 = xla_tuple %s13, %s14, %s15
  %s17 = sld [smem:[#allocation0]]
  $region153: #{tpu_custom_call.1} parent=0
    _
  %s19 = ssub.s32 1, %s17
  %s20 = scalar_select 0, %s19, %s17
  $region1: #{tpu_custom_call.1} parent=0
    #allocation4 [shape = 'u8[8192]{0}', space=vmem, size = 0x2000, scoped, tag = 'input window, operand 0']
    #allocation5 [shape = 's32[2]{0}', space=sflag, size = 0x8, scoped, tag = 'scoped memory for tpu_custom_call.1']
    #allocation6 [shape = 's32[2]{0}', space=sflag, size = 0x8, scoped, tag = 'scoped memory for tpu_custom_call.1']
    #allocation7 [shape = 'u8[262144]{0}', space=vmem, size = 0x40000, scoped, tag = 'input window, operand 1']
    #allocation8 [shape = 's32[2]{0}', space=sflag, size = 0x8, scoped, tag = 'scoped memory for tpu_custom_call.1']
    #allocation9 [shape = 'u8[2048]{0}', space=vmem, size = 0x800, scoped, tag = 'input window, operand 2, single buffered']
    #allocation10 [shape = 'u8[262144]{0}', space=vmem, size = 0x40000, scoped, tag = 'input window, operand 3, single buffered']
    #allocation11 [shape = 's32[1]{0}', space=sflag, size = 0x4, scoped, tag = 'scoped memory for tpu_custom_call.1']
    #allocation12 [shape = 'u8[131072]{0}', space=vmem, size = 0x20000, scoped, tag = 'input window, operand 5, single buffered']
    #allocation13 [shape = 'u8[1024]{0}', space=vmem, size = 0x400, scoped, tag = 'input window, operand 6, single buffered']
    #allocation14 [shape = 's32[1]{0}', space=sflag, size = 0x4, scoped, tag = 'scoped memory for tpu_custom_call.1']
    #allocation15 [shape = 'u8[262144]{0}', space=vmem, size = 0x40000, scoped, tag = 'input window, operand 7, single buffered']
    #allocation16 [shape = 'u8[262144]{0}', space=vmem, size = 0x40000, scoped, tag = 'input window, operand 9']
    #allocation17 [shape = 's32[2]{0}', space=sflag, size = 0x8, scoped, tag = 'scoped memory for tpu_custom_call.1']
    #allocation18 [shape = 'u8[65536]{0}', space=vmem, size = 0x10000, scoped, tag = 'input window, operand 11, single buffered']
    #allocation19 [shape = 'u8[4096]{0}', space=vmem, size = 0x1000, scoped, tag = 'output window, operand 0, single buffered']
    #allocation20 [shape = 'u8[8192]{0}', space=vmem, size = 0x2000, scoped, tag = 'output window, operand 1']
    #allocation21 [shape = 's32[2]{0}', space=sflag, size = 0x8, scoped, tag = 'scoped memory for tpu_custom_call.1']
    #allocation22 [shape = 'u8[8192]{0}', space=vmem, size = 0x2000, scoped, tag = 'output window, operand 2, single buffered']
    %21 = vsyncpa [#allocation5], 0
    %s22 = scalar_lea.sflag [#allocation5], 1
    %23 = vsyncpa %s22, 0
    %24 = vsyncpa [#allocation8], 0
    %s25 = scalar_lea.sflag [#allocation8], 1
    %26 = vsyncpa %s25, 0
    %27 = vsyncpa [#allocation11], 0
    %28 = vsyncpa [#allocation14], 0
    %29 = vsyncpa [#allocation17], 0
    %s30 = scalar_lea.sflag [#allocation17], 1
    %31 = vsyncpa %s30, 0
    %32 = vsyncpa [#allocation6], 0
    %33 = vsyncpa [#allocation21], 0
    %s34 = scalar_lea.sflag [#allocation21], 1
    %35 = vsyncpa %s34, 0
    loop: start=0, step=1, limit=6
    $region2: #{tpu_custom_call.1} parent=1 // loop_pre_header
      _
    $region3: #{tpu_custom_call.1} parent=1 // loop_header
      %s37 = sphi 0, %s41
      %p38 = scmp.ge.s32.totalorder %s37, 6
      %s44 = sphi 0, %s56
      %s45 = sphi 0, %s52
      %s46 = sphi 0, %s44
      %s47 = sphi 0, %s45
      %s48 = sphi 0, %s46
      %s49 = sphi 0, %s47
      %s65 = sphi 0, %s67
      %s68 = sphi 0, %s65
      %s69 = sphi 0, %s68
      %s85 = sphi 0, %s69
      %s97 = sphi 0, %s99
      %s100 = sphi 0, %s97
      %s101 = sphi 0, %s100
      %s117 = sphi 0, %s101
      %s121 = sphi 0, %s121
      %s123 = sphi 0, %s121
      %s124 = sphi 0, %s123
      %s138 = sphi 0, %s124
      %s142 = sphi 0, %s142
      %s144 = sphi 0, %s142
      %s145 = sphi 0, %s144
      %s159 = sphi 0, %s145
      %s163 = sphi 0, %s163
      %s165 = sphi 0, %s163
      %s166 = sphi 0, %s165
      %s180 = sphi 0, %s166
      %s184 = sphi 0, %s184
      %s186 = sphi 0, %s184
      %s187 = sphi 0, %s186
      %s201 = sphi 0, %s187
      %s205 = sphi 0, %s205
      %s207 = sphi 0, %s205
      %s208 = sphi 0, %s207
      %s222 = sphi 0, %s208
      %s226 = sphi 0, %s226
      %s228 = sphi 0, %s226
      %s229 = sphi 0, %s228
      %s243 = sphi 0, %s229
      %s247 = sphi 0, %s247
      %s249 = sphi 0, %s247
      %s250 = sphi 0, %s249
      %s264 = sphi 0, %s250
      %s272 = sphi 0, %s274
      %s275 = sphi 0, %s272
      %s276 = sphi 0, %s275
      %s292 = sphi 0, %s276
      %s300 = sphi 0, %s302
      %s303 = sphi 0, %s300
      %s304 = sphi 0, %s303
      %s320 = sphi 0, %s304
      %s324 = sphi 0, %s324
      %s326 = sphi 0, %s324
      %s327 = sphi 0, %s326
      %s341 = sphi 0, %s327
      %s345 = sphi 0, %s345
      %s347 = sphi 0, %s345
      %s348 = sphi 0, %s347
      %s362 = sphi 0, %s348
      %s366 = sphi 0, %s366
      %s368 = sphi 0, %s366
      %s369 = sphi 0, %s368
      %s383 = sphi 0, %s369
      %s391 = sphi 0, %s393
      %s394 = sphi 0, %s391
      %s395 = sphi 0, %s394
      %s411 = sphi 0, %s395
      %s415 = sphi 0, %s415
      %s417 = sphi 0, %s415
      %s418 = sphi 0, %s417
      %s432 = sphi 0, %s418
    $region4: #{tpu_custom_call.1} parent=1 // loop_header_branch
      %40 = sbr.rel (%p38) target = $region8
    $region5: #{tpu_custom_call.1} parent=1 // loop_body
      %s42 = ssub.s32 %s37, 1
      %s43 = ssub.s32 %s37, 2
      %s50 = sadd.s32 1, %s45
      %p51 = scmp.ge.s32.totalorder %s50, 2
      %s52 = scalar_select %p51, 0, %s50
      %s53 = sadd.s32 1, %s44
      %s54 = scalar_select %p51, %s53, %s44
      %p55 = scmp.ge.s32.totalorder %s54, 2
      %s56 = scalar_select %p55, 0, %s54
      %s57 = ssub.s32 1, %s44
      %s58 = smul.u32 %s45, %s57
      %s59 = sadd.s32 %s58, %s44
      %s60 = ssub.s32 1, %s56
      %s61 = smul.u32 %s52, %s60
      %s62 = sadd.s32 %s61, %s56
      %s63 = ssub.s32 %s59, %s62
      %p64 = scmp.eq.s32.totalorder %s63, 0
      %s66 = sadd.s32 %s65, 1
      %s67 = scalar_select %p64, %s65, %s66
      %p70 = pneg %p64
      %p71 = scmp.eq.s32.totalorder %s37, 3
      %p72 = por %p70, %p71
      %p73 = scmp.ne.s32.totalorder %s65, %s68
      %p74 = scmp.eq.s32.totalorder %s37, 0
      %p75 = por %p73, %p74
      %p76 = scmp.ne.s32.totalorder %s65, %s68
      %p77 = scmp.eq.s32.totalorder %s42, 3
      %p78 = por %p76, %p77
      %p79 = scmp.ne.s32.totalorder %s68, %s69
      %p80 = scmp.eq.s32.totalorder %s42, 0
      %p81 = por %p79, %p80
      %p82 = scmp.ne.s32.totalorder %s68, %s69
      %p83 = scmp.eq.s32.totalorder %s43, 3
      %p84 = por %p82, %p83
      %p86 = scmp.ne.s32.totalorder %s69, %s85
      %p87 = scmp.eq.s32.totalorder %s43, 0
      %p88 = por %p86, %p87
      %s89 = ssub.s32 1, %s44
      %s90 = smul.u32 %s45, %s89
      %s91 = sadd.s32 %s90, %s44
      %s92 = ssub.s32 1, %s56
      %s93 = smul.u32 %s52, %s92
      %s94 = sadd.s32 %s93, %s56
      %s95 = ssub.s32 %s91, %s94
      %p96 = scmp.eq.s32.totalorder %s95, 0
      %s98 = sadd.s32 %s97, 1
      %s99 = scalar_select %p96, %s97, %s98
      %p102 = pneg %p96
      %p103 = scmp.eq.s32.totalorder %s37, 3
      %p104 = por %p102, %p103
      %p105 = scmp.ne.s32.totalorder %s97, %s100
      %p106 = scmp.eq.s32.totalorder %s37, 0
      %p107 = por %p105, %p106
      %p108 = scmp.ne.s32.totalorder %s97, %s100
      %p109 = scmp.eq.s32.totalorder %s42, 3
      %p110 = por %p108, %p109
      %p111 = scmp.ne.s32.totalorder %s100, %s101
      %p112 = scmp.eq.s32.totalorder %s42, 0
      %p113 = por %p111, %p112
      %p114 = scmp.ne.s32.totalorder %s100, %s101
      %p115 = scmp.eq.s32.totalorder %s43, 3
      %p116 = por %p114, %p115
      %p118 = scmp.ne.s32.totalorder %s101, %s117
      %p119 = scmp.eq.s32.totalorder %s43, 0
      %p120 = por %p118, %p119
      %s122 = sadd.s32 %s121, 1
      %p125 = scmp.eq.s32.totalorder %s37, 3
      %p126 = scmp.ne.s32.totalorder %s121, %s123
      %p127 = scmp.eq.s32.totalorder %s37, 0
      %p128 = por %p126, %p127
      %p129 = scmp.ne.s32.totalorder %s121, %s123
      %p130 = scmp.eq.s32.totalorder %s42, 3
      %p131 = por %p129, %p130
      %p132 = scmp.ne.s32.totalorder %s123, %s124
      %p133 = scmp.eq.s32.totalorder %s42, 0
      %p134 = por %p132, %p133
      %p135 = scmp.ne.s32.totalorder %s123, %s124
      %p136 = scmp.eq.s32.totalorder %s43, 3
      %p137 = por %p135, %p136
      %p139 = scmp.ne.s32.totalorder %s124, %s138
      %p140 = scmp.eq.s32.totalorder %s43, 0
      %p141 = por %p139, %p140
      %s143 = sadd.s32 %s142, 1
      %p146 = scmp.eq.s32.totalorder %s37, 3
      %p147 = scmp.ne.s32.totalorder %s142, %s144
      %p148 = scmp.eq.s32.totalorder %s37, 0
      %p149 = por %p147, %p148
      %p150 = scmp.ne.s32.totalorder %s142, %s144
      %p151 = scmp.eq.s32.totalorder %s42, 3
      %p152 = por %p150, %p151
      %p153 = scmp.ne.s32.totalorder %s144, %s145
      %p154 = scmp.eq.s32.totalorder %s42, 0
      %p155 = por %p153, %p154
      %p156 = scmp.ne.s32.totalorder %s144, %s145
      %p157 = scmp.eq.s32.totalorder %s43, 3
      %p158 = por %p156, %p157
      %p160 = scmp.ne.s32.totalorder %s145, %s159
      %p161 = scmp.eq.s32.totalorder %s43, 0
      %p162 = por %p160, %p161
      %s164 = sadd.s32 %s163, 1
      %p167 = scmp.eq.s32.totalorder %s37, 3
      %p168 = scmp.ne.s32.totalorder %s163, %s165
      %p169 = scmp.eq.s32.totalorder %s37, 0
      %p170 = por %p168, %p169
      %p171 = scmp.ne.s32.totalorder %s163, %s165
      %p172 = scmp.eq.s32.totalorder %s42, 3
      %p173 = por %p171, %p172
      %p174 = scmp.ne.s32.totalorder %s165, %s166
      %p175 = scmp.eq.s32.totalorder %s42, 0
      %p176 = por %p174, %p175
      %p177 = scmp.ne.s32.totalorder %s165, %s166
      %p178 = scmp.eq.s32.totalorder %s43, 3
      %p179 = por %p177, %p178
      %p181 = scmp.ne.s32.totalorder %s166, %s180
      %p182 = scmp.eq.s32.totalorder %s43, 0
      %p183 = por %p181, %p182
      %s185 = sadd.s32 %s184, 1
      %p188 = scmp.eq.s32.totalorder %s37, 3
      %p189 = scmp.ne.s32.totalorder %s184, %s186
      %p190 = scmp.eq.s32.totalorder %s37, 0
      %p191 = por %p189, %p190
      %p192 = scmp.ne.s32.totalorder %s184, %s186
      %p193 = scmp.eq.s32.totalorder %s42, 3
      %p194 = por %p192, %p193
      %p195 = scmp.ne.s32.totalorder %s186, %s187
      %p196 = scmp.eq.s32.totalorder %s42, 0
      %p197 = por %p195, %p196
      %p198 = scmp.ne.s32.totalorder %s186, %s187
      %p199 = scmp.eq.s32.totalorder %s43, 3
      %p200 = por %p198, %p199
      %p202 = scmp.ne.s32.totalorder %s187, %s201
      %p203 = scmp.eq.s32.totalorder %s43, 0
      %p204 = por %p202, %p203
      %s206 = sadd.s32 %s205, 1
      %p209 = scmp.eq.s32.totalorder %s37, 3
      %p210 = scmp.ne.s32.totalorder %s205, %s207
      %p211 = scmp.eq.s32.totalorder %s37, 0
      %p212 = por %p210, %p211
      %p213 = scmp.ne.s32.totalorder %s205, %s207
      %p214 = scmp.eq.s32.totalorder %s42, 3
      %p215 = por %p213, %p214
      %p216 = scmp.ne.s32.totalorder %s207, %s208
      %p217 = scmp.eq.s32.totalorder %s42, 0
      %p218 = por %p216, %p217
      %p219 = scmp.ne.s32.totalorder %s207, %s208
      %p220 = scmp.eq.s32.totalorder %s43, 3
      %p221 = por %p219, %p220
      %p223 = scmp.ne.s32.totalorder %s208, %s222
      %p224 = scmp.eq.s32.totalorder %s43, 0
      %p225 = por %p223, %p224
      %s227 = sadd.s32 %s226, 1
      %p230 = scmp.eq.s32.totalorder %s37, 3
      %p231 = scmp.ne.s32.totalorder %s226, %s228
      %p232 = scmp.eq.s32.totalorder %s37, 0
      %p233 = por %p231, %p232
      %p234 = scmp.ne.s32.totalorder %s226, %s228
      %p235 = scmp.eq.s32.totalorder %s42, 3
      %p236 = por %p234, %p235
      %p237 = scmp.ne.s32.totalorder %s228, %s229
      %p238 = scmp.eq.s32.totalorder %s42, 0
      %p239 = por %p237, %p238
      %p240 = scmp.ne.s32.totalorder %s228, %s229
      %p241 = scmp.eq.s32.totalorder %s43, 3
      %p242 = por %p240, %p241
      %p244 = scmp.ne.s32.totalorder %s229, %s243
      %p245 = scmp.eq.s32.totalorder %s43, 0
      %p246 = por %p244, %p245
      %s248 = sadd.s32 %s247, 1
      %p251 = scmp.eq.s32.totalorder %s37, 3
      %p252 = scmp.ne.s32.totalorder %s247, %s249
      %p253 = scmp.eq.s32.totalorder %s37, 0
      %p254 = por %p252, %p253
      %p255 = scmp.ne.s32.totalorder %s247, %s249
      %p256 = scmp.eq.s32.totalorder %s42, 3
      %p257 = por %p255, %p256
      %p258 = scmp.ne.s32.totalorder %s249, %s250
      %p259 = scmp.eq.s32.totalorder %s42, 0
      %p260 = por %p258, %p259
      %p261 = scmp.ne.s32.totalorder %s249, %s250
      %p262 = scmp.eq.s32.totalorder %s43, 3
      %p263 = por %p261, %p262
      %p265 = scmp.ne.s32.totalorder %s250, %s264
      %p266 = scmp.eq.s32.totalorder %s43, 0
      %p267 = por %p265, %p266
      %s268 = smul.u32 %s45, %s44
      %s269 = smul.u32 %s52, %s56
      %s270 = ssub.s32 %s268, %s269
      %p271 = scmp.eq.s32.totalorder %s270, 0
      %s273 = sadd.s32 %s272, 1
      %s274 = scalar_select %p271, %s272, %s273
      %p277 = pneg %p271
      %p278 = scmp.eq.s32.totalorder %s37, 3
      %p279 = por %p277, %p278
      %p280 = scmp.ne.s32.totalorder %s272, %s275
      %p281 = scmp.eq.s32.totalorder %s37, 0
      %p282 = por %p280, %p281
      %p283 = scmp.ne.s32.totalorder %s272, %s275
      %p284 = scmp.eq.s32.totalorder %s42, 3
      %p285 = por %p283, %p284
      %p286 = scmp.ne.s32.totalorder %s275, %s276
      %p287 = scmp.eq.s32.totalorder %s42, 0
      %p288 = por %p286, %p287
      %p289 = scmp.ne.s32.totalorder %s275, %s276
      %p290 = scmp.eq.s32.totalorder %s43, 3
      %p291 = por %p289, %p290
      %p293 = scmp.ne.s32.totalorder %s276, %s292
      %p294 = scmp.eq.s32.totalorder %s43, 0
      %p295 = por %p293, %p294
      %s296 = smul.u32 %s45, %s44
      %s297 = smul.u32 %s52, %s56
      %s298 = ssub.s32 %s296, %s297
      %p299 = scmp.eq.s32.totalorder %s298, 0
      %s301 = sadd.s32 %s300, 1
      %s302 = scalar_select %p299, %s300, %s301
      %p305 = pneg %p299
      %p306 = scmp.eq.s32.totalorder %s37, 3
      %p307 = por %p305, %p306
      %p308 = scmp.ne.s32.totalorder %s300, %s303
      %p309 = scmp.eq.s32.totalorder %s37, 0
      %p310 = por %p308, %p309
      %p311 = scmp.ne.s32.totalorder %s300, %s303
      %p312 = scmp.eq.s32.totalorder %s42, 3
      %p313 = por %p311, %p312
      %p314 = scmp.ne.s32.totalorder %s303, %s304
      %p315 = scmp.eq.s32.totalorder %s42, 0
      %p316 = por %p314, %p315
      %p317 = scmp.ne.s32.totalorder %s303, %s304
      %p318 = scmp.eq.s32.totalorder %s43, 3
      %p319 = por %p317, %p318
      %p321 = scmp.ne.s32.totalorder %s304, %s320
      %p322 = scmp.eq.s32.totalorder %s43, 0
      %p323 = por %p321, %p322
      %s325 = sadd.s32 %s324, 1
      %p328 = scmp.eq.s32.totalorder %s37, 3
      %p329 = scmp.ne.s32.totalorder %s324, %s326
      %p330 = scmp.eq.s32.totalorder %s37, 0
      %p331 = por %p329, %p330
      %p332 = scmp.ne.s32.totalorder %s324, %s326
      %p333 = scmp.eq.s32.totalorder %s42, 3
      %p334 = por %p332, %p333
      %p335 = scmp.ne.s32.totalorder %s326, %s327
      %p336 = scmp.eq.s32.totalorder %s42, 0
      %p337 = por %p335, %p336
      %p338 = scmp.ne.s32.totalorder %s326, %s327
      %p339 = scmp.eq.s32.totalorder %s43, 3
      %p340 = por %p338, %p339
      %p342 = scmp.ne.s32.totalorder %s327, %s341
      %p343 = scmp.eq.s32.totalorder %s43, 0
      %p344 = por %p342, %p343
      %s346 = sadd.s32 %s345, 1
      %p349 = scmp.eq.s32.totalorder %s37, 3
      %p350 = scmp.ne.s32.totalorder %s345, %s347
      %p351 = scmp.eq.s32.totalorder %s37, 0
      %p352 = por %p350, %p351
      %p353 = scmp.ne.s32.totalorder %s345, %s347
      %p354 = scmp.eq.s32.totalorder %s42, 3
      %p355 = por %p353, %p354
      %p356 = scmp.ne.s32.totalorder %s347, %s348
      %p357 = scmp.eq.s32.totalorder %s42, 0
      %p358 = por %p356, %p357
      %p359 = scmp.ne.s32.totalorder %s347, %s348
      %p360 = scmp.eq.s32.totalorder %s43, 3
      %p361 = por %p359, %p360
      %p363 = scmp.ne.s32.totalorder %s348, %s362
      %p364 = scmp.eq.s32.totalorder %s43, 0
      %p365 = por %p363, %p364
      %s367 = sadd.s32 %s366, 1
      %p370 = scmp.eq.s32.totalorder %s37, 3
      %p371 = scmp.ne.s32.totalorder %s366, %s368
      %p372 = scmp.eq.s32.totalorder %s37, 0
      %p373 = por %p371, %p372
      %p374 = scmp.ne.s32.totalorder %s366, %s368
      %p375 = scmp.eq.s32.totalorder %s42, 3
      %p376 = por %p374, %p375
      %p377 = scmp.ne.s32.totalorder %s368, %s369
      %p378 = scmp.eq.s32.totalorder %s42, 0
      %p379 = por %p377, %p378
      %p380 = scmp.ne.s32.totalorder %s368, %s369
      %p381 = scmp.eq.s32.totalorder %s43, 3
      %p382 = por %p380, %p381
      %p384 = scmp.ne.s32.totalorder %s369, %s383
      %p385 = scmp.eq.s32.totalorder %s43, 0
      %p386 = por %p384, %p385
      %s387 = smul.u32 %s45, %s44
      %s388 = smul.u32 %s52, %s56
      %s389 = ssub.s32 %s387, %s388
      %p390 = scmp.eq.s32.totalorder %s389, 0
      %s392 = sadd.s32 %s391, 1
      %s393 = scalar_select %p390, %s391, %s392
      %p396 = pneg %p390
      %p397 = scmp.eq.s32.totalorder %s37, 3
      %p398 = por %p396, %p397
      %p399 = scmp.ne.s32.totalorder %s391, %s394
      %p400 = scmp.eq.s32.totalorder %s37, 0
      %p401 = por %p399, %p400
      %p402 = scmp.ne.s32.totalorder %s391, %s394
      %p403 = scmp.eq.s32.totalorder %s42, 3
      %p404 = por %p402, %p403
      %p405 = scmp.ne.s32.totalorder %s394, %s395
      %p406 = scmp.eq.s32.totalorder %s42, 0
      %p407 = por %p405, %p406
      %p408 = scmp.ne.s32.totalorder %s394, %s395
      %p409 = scmp.eq.s32.totalorder %s43, 3
      %p410 = por %p408, %p409
      %p412 = scmp.ne.s32.totalorder %s395, %s411
      %p413 = scmp.eq.s32.totalorder %s43, 0
      %p414 = por %p412, %p413
      %s416 = sadd.s32 %s415, 1
      %p419 = scmp.eq.s32.totalorder %s37, 3
      %p420 = scmp.ne.s32.totalorder %s415, %s417
      %p421 = scmp.eq.s32.totalorder %s37, 0
      %p422 = por %p420, %p421
      %p423 = scmp.ne.s32.totalorder %s415, %s417
      %p424 = scmp.eq.s32.totalorder %s42, 3
      %p425 = por %p423, %p424
      %p426 = scmp.ne.s32.totalorder %s417, %s418
      %p427 = scmp.eq.s32.totalorder %s42, 0
      %p428 = por %p426, %p427
      %p429 = scmp.ne.s32.totalorder %s417, %s418
      %p430 = scmp.eq.s32.totalorder %s43, 3
      %p431 = por %p429, %p430
      %p433 = scmp.ne.s32.totalorder %s418, %s432
      %p434 = scmp.eq.s32.totalorder %s43, 0
      %p435 = por %p433, %p434
      %p436 = scmp.le.s32.totalorder 1, %s37
      %p437 = scmp.lt.s32.totalorder %s37, 5
      %p438 = pnand %p436, %p437
      %p439 = pneg %p438
      // Predicated region
      $region9: #{tpu_custom_call.1} parent=5 // pred_check
        _
      $region10: #{tpu_custom_call.1} parent=5 // pred_check_branch
        %441 = sbr.rel (%p438) target = $region12
      $region11: #{tpu_custom_call.1} parent=5 // pred_region
        %s442 = ssub.s32 %s37, 1
        // Predicated region
        $region13: #{tpu_custom_call.1} parent=11 // pred_check
          %p443 = pneg %p134
        $region14: #{tpu_custom_call.1} parent=11 // pred_check_branch
          %445 = sbr.rel (%p443) target = $region16
        $region15: #{tpu_custom_call.1} parent=11 // pred_region
          %447 = vsyncadd [#allocation8], 0
          %s449 = sshll.u32 %s2, 4
          %s450 = int_to_ptr.hbm [resolvable:$true] %s449
          %s451 = sshll.u32 [#allocation9], 4
          %s452 = int_to_ptr.vmem [resolvable:$true] %s451
          %454 = dma.hbm_to_vmem [thread:$0]  %s450, 64, %s452, [#allocation8]
        $region16: #{tpu_custom_call.1} parent=11 // pred_fallthru
          _
        // Predicated region
        $region17: #{tpu_custom_call.1} parent=11 // pred_check
          %p455 = pneg %p155
        $region18: #{tpu_custom_call.1} parent=11 // pred_check_branch
          %457 = sbr.rel (%p455) target = $region20
        $region19: #{tpu_custom_call.1} parent=11 // pred_region
          %459 = vsyncadd [#allocation11], 0
          %s460 = sshll.u32 %s3, 4
          %s461 = int_to_ptr.hbm [resolvable:$true] %s460
          %s462 = sshll.u32 [#allocation10], 4
          %s463 = int_to_ptr.vmem [resolvable:$true] %s462
          %468 = dma.hbm_to_vmem [thread:$0]  %s461, 8192, %s463, [#allocation11], 128, 128, 8
        $region20: #{tpu_custom_call.1} parent=11 // pred_fallthru
          _
        // Predicated region
        $region21: #{tpu_custom_call.1} parent=11 // pred_check
          %p469 = pneg %p176
        $region22: #{tpu_custom_call.1} parent=11 // pred_check_branch
          %471 = sbr.rel (%p469) target = $region24
        $region23: #{tpu_custom_call.1} parent=11 // pred_region
          _
        $region24: #{tpu_custom_call.1} parent=11 // pred_fallthru
          _
        // Predicated region
        $region25: #{tpu_custom_call.1} parent=11 // pred_check
          %p472 = pneg %p197
        $region26: #{tpu_custom_call.1} parent=11 // pred_check_branch
          %474 = sbr.rel (%p472) target = $region28
        $region27: #{tpu_custom_call.1} parent=11 // pred_region
          %476 = vsyncadd [#allocation11], 0
          %s477 = sshll.u32 %s5, 4
          %s478 = int_to_ptr.hbm [resolvable:$true] %s477
          %s479 = sshll.u32 [#allocation12], 4
          %s480 = int_to_ptr.vmem [resolvable:$true] %s479
          %485 = dma.hbm_to_vmem [thread:$0]  %s478, 4096, %s480, [#allocation11], 128, 128, 8
        $region28: #{tpu_custom_call.1} parent=11 // pred_fallthru
          _
        // Predicated region
        $region29: #{tpu_custom_call.1} parent=11 // pred_check
          %p486 = pneg %p218
        $region30: #{tpu_custom_call.1} parent=11 // pred_check_branch
          %488 = sbr.rel (%p486) target = $region32
        $region31: #{tpu_custom_call.1} parent=11 // pred_region
          %490 = vsyncadd [#allocation14], 0
          %s492 = sshll.u32 %s6, 4
          %s493 = int_to_ptr.hbm [resolvable:$true] %s492
          %s494 = sshll.u32 [#allocation13], 4
          %s495 = int_to_ptr.vmem [resolvable:$true] %s494
          %497 = dma.hbm_to_vmem [thread:$0]  %s493, 32, %s495, [#allocation14]
        $region32: #{tpu_custom_call.1} parent=11 // pred_fallthru
          _
        // Predicated region
        $region33: #{tpu_custom_call.1} parent=11 // pred_check
          %p498 = pneg %p239
        $region34: #{tpu_custom_call.1} parent=11 // pred_check_branch
          %500 = sbr.rel (%p498) target = $region36
        $region35: #{tpu_custom_call.1} parent=11 // pred_region
          %502 = vsyncadd [#allocation14], 0
          %s503 = sshll.u32 %s7, 4
          %s504 = int_to_ptr.hbm [resolvable:$true] %s503
          %s505 = sshll.u32 [#allocation15], 4
          %s506 = int_to_ptr.vmem [resolvable:$true] %s505
          %511 = dma.hbm_to_vmem [thread:$0]  %s504, 8192, %s506, [#allocation14], 256, 256, 16
        $region36: #{tpu_custom_call.1} parent=11 // pred_fallthru
          _
        // Predicated region
        $region37: #{tpu_custom_call.1} parent=11 // pred_check
          %p512 = pneg %p260
        $region38: #{tpu_custom_call.1} parent=11 // pred_check_branch
          %514 = sbr.rel (%p512) target = $region40
        $region39: #{tpu_custom_call.1} parent=11 // pred_region
          _
        $region40: #{tpu_custom_call.1} parent=11 // pred_fallthru
          _
        // Predicated region
        $region41: #{tpu_custom_call.1} parent=11 // pred_check
          %p515 = pneg %p337
        $region42: #{tpu_custom_call.1} parent=11 // pred_check_branch
          %517 = sbr.rel (%p515) target = $region44
        $region43: #{tpu_custom_call.1} parent=11 // pred_region
          %519 = vsyncadd [#allocation17], 0
          %s520 = sshll.u32 %s11, 4
          %s521 = int_to_ptr.hbm [resolvable:$true] %s520
          %s522 = sshll.u32 [#allocation18], 4
          %s523 = int_to_ptr.vmem [resolvable:$true] %s522
          %528 = dma.hbm_to_vmem [thread:$0]  %s521, 2048, %s523, [#allocation17], 64, 64, 4
        $region44: #{tpu_custom_call.1} parent=11 // pred_fallthru
          _
        // Predicated region
        $region45: #{tpu_custom_call.1} parent=11 // pred_check
          %p529 = pneg %p358
        $region46: #{tpu_custom_call.1} parent=11 // pred_check_branch
          %531 = sbr.rel (%p529) target = $region48
        $region47: #{tpu_custom_call.1} parent=11 // pred_region
          _
        $region48: #{tpu_custom_call.1} parent=11 // pred_fallthru
          _
      $region12: #{tpu_custom_call.1} parent=5 // pred_fallthru
        _
      %p532 = scmp.lt.s32.totalorder %s37, 4
      // Predicated region
      $region49: #{tpu_custom_call.1} parent=5 // pred_check
        %p533 = pneg %p532
      $region50: #{tpu_custom_call.1} parent=5 // pred_check_branch
        %535 = sbr.rel (%p533) target = $region52
      $region51: #{tpu_custom_call.1} parent=5 // pred_region
        // Predicated region
        $region53: #{tpu_custom_call.1} parent=51 // pred_check
          %p536 = pneg %p75
        $region54: #{tpu_custom_call.1} parent=51 // pred_check_branch
          %538 = sbr.rel (%p536) target = $region56
        $region55: #{tpu_custom_call.1} parent=51 // pred_region
          %s539 = sand.u32 %s65, 1
          %s540 = scalar_lea.sflag [#allocation5], %s539
          %s541 = sand.u32 %s65, 1
          %s542 = smul.addr %s541, 8
          %s543 = scalar_lea.vmem [#allocation4], %s542
          %s544 = ssub.s32 1, %s44
          %s545 = smul.u32 %s45, %s544
          %s546 = sadd.s32 %s545, %s44
          %548 = vsyncadd %s540, 0
          %s549 = smul.addr %s546, 8
          %s550 = scalar_lea.hbm %s0, %s549
          %s552 = sshll.u32 %s550, 4
          %s553 = int_to_ptr.hbm [resolvable:$true] %s552
          %s554 = sshll.u32 %s543, 4
          %s555 = int_to_ptr.vmem [resolvable:$true] %s554
          %557 = dma.hbm_to_vmem [thread:$0]  %s553, 128, %s555, %s540
        $region56: #{tpu_custom_call.1} parent=51 // pred_fallthru
          _
        // Predicated region
        $region57: #{tpu_custom_call.1} parent=51 // pred_check
          %p558 = pneg %p107
        $region58: #{tpu_custom_call.1} parent=51 // pred_check_branch
          %560 = sbr.rel (%p558) target = $region60
        $region59: #{tpu_custom_call.1} parent=51 // pred_region
          %s561 = sand.u32 %s37, 1
          %s562 = scalar_lea.sflag [#allocation8], %s561
          %s563 = sand.u32 %s97, 1
          %s564 = smul.addr %s563, 256
          %s565 = scalar_lea.vmem [#allocation7], %s564
          %s566 = ssub.s32 1, %s44
          %s567 = smul.u32 %s45, %s566
          %s568 = sadd.s32 %s567, %s44
          %s569 = smul.u32 16, %s568
          %571 = vsyncadd %s562, 0
          %s572 = smul.addr %s569, 4
          %s573 = smul.addr %s572, 4
          %s574 = scalar_lea.hbm %s1, %s573
          %s575 = sshll.u32 %s574, 4
          %s576 = int_to_ptr.hbm [resolvable:$true] %s575
          %s577 = sshll.u32 %s565, 4
          %s578 = int_to_ptr.vmem [resolvable:$true] %s577
          %583 = dma.hbm_to_vmem [thread:$0]  %s576, 4096, %s578, %s562, 256, 256, 16
        $region60: #{tpu_custom_call.1} parent=51 // pred_fallthru
          _
        // Predicated region
        $region61: #{tpu_custom_call.1} parent=51 // pred_check
          %p584 = pneg %p282
        $region62: #{tpu_custom_call.1} parent=51 // pred_check_branch
          %586 = sbr.rel (%p584) target = $region64
        $region63: #{tpu_custom_call.1} parent=51 // pred_region
          %s587 = sand.u32 %s37, 1
          %s588 = scalar_lea.sflag [#allocation17], %s587
          %s589 = sand.u32 %s272, 1
          %s590 = smul.addr %s589, 256
          %s591 = scalar_lea.vmem [#allocation16], %s590
          %s592 = smul.u32 %s45, %s44
          %594 = vsyncadd %s588, 0
          %s595 = smul.addr %s592, 4
          %s596 = scalar_lea.hbm %s9, %s595
          %s597 = sshll.u32 %s596, 4
          %s598 = int_to_ptr.hbm [resolvable:$true] %s597
          %s599 = sshll.u32 %s591, 4
          %s600 = int_to_ptr.vmem [resolvable:$true] %s599
          %605 = dma.hbm_to_vmem [thread:$0]  %s598, 4096, %s600, %s588, 128, 64, 4
        $region64: #{tpu_custom_call.1} parent=51 // pred_fallthru
          _
        // Predicated region
        $region65: #{tpu_custom_call.1} parent=51 // pred_check
          %p606 = pneg %p310
        $region66: #{tpu_custom_call.1} parent=51 // pred_check_branch
          %608 = sbr.rel (%p606) target = $region68
        $region67: #{tpu_custom_call.1} parent=51 // pred_region
          %s609 = smul.u32 %s45, %s44
          %p610 = scmp.lt.s32.totalorder %s609, 1
          %s611 = scalar_select %p610, %s609, 1
          %s612 = scalar_lea.vmem %s10, %s611
          %s613 = smul.u32 %s45, %s44
        $region68: #{tpu_custom_call.1} parent=51 // pred_fallthru
          _
      $region52: #{tpu_custom_call.1} parent=5 // pred_fallthru
        _
      %p614 = scmp.le.s32.totalorder 1, %s37
      %p615 = scmp.lt.s32.totalorder %s37, 5
      %p616 = pnand %p614, %p615
      %p617 = pneg %p616
      // Predicated region
      $region69: #{tpu_custom_call.1} parent=5 // pred_check
        _
      $region70: #{tpu_custom_call.1} parent=5 // pred_check_branch
        %619 = sbr.rel (%p616) target = $region72
      $region71: #{tpu_custom_call.1} parent=5 // pred_region
        %s620 = ssub.s32 %s37, 1
        %s621 = sand.u32 %s68, 1
        %s622 = scalar_lea.sflag [#allocation5], %s621
        %s623 = sand.u32 %s68, 1
        %s624 = smul.addr %s623, 8
        %s625 = scalar_lea.vmem [#allocation4], %s624
        // Predicated region
        $region73: #{tpu_custom_call.1} parent=71 // pred_check
          %p626 = pneg %p81
        $region74: #{tpu_custom_call.1} parent=71 // pred_check_branch
          %628 = sbr.rel (%p626) target = $region76
        $region75: #{tpu_custom_call.1} parent=71 // pred_region
          %630 = dma.done %s622, 128
        $region76: #{tpu_custom_call.1} parent=71 // pred_fallthru
          _
        %s631 = sand.u32 %s42, 1
        %s632 = scalar_lea.sflag [#allocation8], %s631
        %s633 = sand.u32 %s100, 1
        %s634 = smul.addr %s633, 256
        %s635 = scalar_lea.vmem [#allocation7], %s634
        // Predicated region
        $region77: #{tpu_custom_call.1} parent=71 // pred_check
          %p636 = pneg %p113
        $region78: #{tpu_custom_call.1} parent=71 // pred_check_branch
          %638 = sbr.rel (%p636) target = $region80
        $region79: #{tpu_custom_call.1} parent=71 // pred_region
          %640 = dma.done %s632, 4096
        $region80: #{tpu_custom_call.1} parent=71 // pred_fallthru
          _
        // Predicated region
        $region81: #{tpu_custom_call.1} parent=71 // pred_check
          %p641 = pneg %p134
        $region82: #{tpu_custom_call.1} parent=71 // pred_check_branch
          %643 = sbr.rel (%p641) target = $region84
        $region83: #{tpu_custom_call.1} parent=71 // pred_region
          %645 = dma.done [#allocation8], 64
        $region84: #{tpu_custom_call.1} parent=71 // pred_fallthru
          _
        // Predicated region
        $region85: #{tpu_custom_call.1} parent=71 // pred_check
          %p646 = pneg %p155
        $region86: #{tpu_custom_call.1} parent=71 // pred_check_branch
          %648 = sbr.rel (%p646) target = $region88
        $region87: #{tpu_custom_call.1} parent=71 // pred_region
          %650 = dma.done [#allocation11], 8192
        $region88: #{tpu_custom_call.1} parent=71 // pred_fallthru
          _
        // Predicated region
        $region89: #{tpu_custom_call.1} parent=71 // pred_check
          %p651 = pneg %p197
        $region90: #{tpu_custom_call.1} parent=71 // pred_check_branch
          %653 = sbr.rel (%p651) target = $region92
        $region91: #{tpu_custom_call.1} parent=71 // pred_region
          %655 = dma.done [#allocation11], 4096
        $region92: #{tpu_custom_call.1} parent=71 // pred_fallthru
          _
        // Predicated region
        $region93: #{tpu_custom_call.1} parent=71 // pred_check
          %p656 = pneg %p218
        $region94: #{tpu_custom_call.1} parent=71 // pred_check_branch
          %658 = sbr.rel (%p656) target = $region96
        $region95: #{tpu_custom_call.1} parent=71 // pred_region
          %660 = dma.done [#allocation14], 32
        $region96: #{tpu_custom_call.1} parent=71 // pred_fallthru
          _
        // Predicated region
        $region97: #{tpu_custom_call.1} parent=71 // pred_check
          %p661 = pneg %p239
        $region98: #{tpu_custom_call.1} parent=71 // pred_check_branch
          %663 = sbr.rel (%p661) target = $region100
        $region99: #{tpu_custom_call.1} parent=71 // pred_region
          %665 = dma.done [#allocation14], 8192
        $region100: #{tpu_custom_call.1} parent=71 // pred_fallthru
          _
        %s666 = sand.u32 %s42, 1
        %s667 = scalar_lea.sflag [#allocation17], %s666
        %s668 = sand.u32 %s275, 1
        %s669 = smul.addr %s668, 256
        %s670 = scalar_lea.vmem [#allocation16], %s669
        // Predicated region
        $region101: #{tpu_custom_call.1} parent=71 // pred_check
          %p671 = pneg %p288
        $region102: #{tpu_custom_call.1} parent=71 // pred_check_branch
          %673 = sbr.rel (%p671) target = $region104
        $region103: #{tpu_custom_call.1} parent=71 // pred_region
          %675 = dma.done %s667, 4096
        $region104: #{tpu_custom_call.1} parent=71 // pred_fallthru
          _
        // Predicated region
        $region105: #{tpu_custom_call.1} parent=71 // pred_check
          %p676 = pneg %p337
        $region106: #{tpu_custom_call.1} parent=71 // pred_check_branch
          %678 = sbr.rel (%p676) target = $region108
        $region107: #{tpu_custom_call.1} parent=71 // pred_region
          %680 = dma.done [#allocation17], 2048
        $region108: #{tpu_custom_call.1} parent=71 // pred_fallthru
          _
        %s681 = sand.u32 %s68, 1
        %s682 = scalar_lea.sflag [#allocation5], %s681
        %s683 = sand.u32 %s68, 1
        %s684 = smul.addr %s683, 8
        %s685 = scalar_lea.vmem [#allocation4], %s684
        %p686 = pneg %p81
        %p687 = pneg %p78
        %s688 = sand.u32 %s42, 1
        %s689 = scalar_lea.sflag [#allocation8], %s688
        %s690 = sand.u32 %s100, 1
        %s691 = smul.addr %s690, 256
        %s692 = scalar_lea.vmem [#allocation7], %s691
        %p693 = pneg %p113
        %p694 = pneg %p110
        %p695 = pneg %p134
        %p696 = pneg %p131
        %p697 = pneg %p155
        %p698 = pneg %p152
        %p699 = pneg %p176
        %p700 = pneg %p173
        %p701 = pneg %p197
        %p702 = pneg %p194
        %p703 = pneg %p218
        %p704 = pneg %p215
        %p705 = pneg %p239
        %p706 = pneg %p236
        %p707 = pneg %p260
        %p708 = pneg %p257
        %s709 = sand.u32 %s42, 1
        %s710 = scalar_lea.sflag [#allocation17], %s709
        %s711 = sand.u32 %s275, 1
        %s712 = smul.addr %s711, 256
        %s713 = scalar_lea.vmem [#allocation16], %s712
        %p714 = pneg %p288
        %p715 = pneg %p285
        %s716 = smul.u32 %s47, %s46
        %p717 = scmp.lt.s32.totalorder %s716, 1
        %s718 = scalar_select %p717, %s716, 1
        %s719 = scalar_lea.vmem %s10, %s718
        %p720 = pneg %p316
        %p721 = pneg %p313
        %p722 = pneg %p337
        %p723 = pneg %p334
        %p724 = pneg %p358
        %p725 = pneg %p355
        %p726 = pneg %p379
        %p727 = pneg %p376
        %p728 = pneg %p407
        %p729 = pneg %p404
        %s730 = sand.u32 %s42, 1
        %s731 = scalar_lea.sflag [#allocation21], %s730
        %s732 = sand.u32 %s394, 1
        %s733 = smul.addr %s732, 8
        %s734 = scalar_lea.vmem [#allocation20], %s733
        %p735 = pneg %p428
        %p736 = pneg %p425
        %s737 = ssub.s32 1, %s46
        %s738 = smul.u32 %s47, %s737
        %s739 = sadd.s32 %s738, %s46
        %s740 = ssub.s32 1, %s46
        %s741 = smul.u32 %s47, %s740
        %s742 = sadd.s32 %s741, %s46
        %s743 = smul.u32 16, %s742
        %s744 = smul.u32 %s47, %s46
        %s745 = smul.u32 %s47, %s46
        %p746 = scmp.lt.s32.totalorder %s745, 1
        %s747 = scalar_select %p746, %s745, 1
        %s748 = scalar_lea.vmem %s10, %s747
        %s749 = smul.u32 %s47, %s46
        %s750 = smul.u32 %s47, %s46
        %p751 = scmp.eq.s32.totalorder %s46, 0
        %p752 = scmp.eq.s32.totalorder %s47, 0
        %p753 = pnand %p751, %p752
        %p754 = pneg %p753
        // Predicated region
        $region109: #{tpu_custom_call.1} parent=71 // pred_check
          _
        $region110: #{tpu_custom_call.1} parent=71 // pred_check_branch
          %756 = sbr.rel (%p753) target = $region112
        $region111: #{tpu_custom_call.1} parent=71 // pred_region
          %757 = vst [vmem:[#allocation2] sm:$0xff] 0.0
          %758 = vst [vmem:[#allocation2 + $0x8] sm:$0xff] 0.0
          %759 = vst [vmem:[#allocation2 + $0x10] sm:$0xff] 0.0
          %760 = vst [vmem:[#allocation2 + $0x18] sm:$0xff] 0.0
        $region112: #{tpu_custom_call.1} parent=71 // pred_fallthru
          _
        // Predicated region
        $region113: #{tpu_custom_call.1} parent=71 // pred_check
          %p761 = pneg %p751
        $region114: #{tpu_custom_call.1} parent=71 // pred_check_branch
          %763 = sbr.rel (%p761) target = $region116
        $region115: #{tpu_custom_call.1} parent=71 // pred_region
          %v764 = vld [vmem:[%s625] sm:$0xff]
          %v765 = vpack.c.bf16 %v764, %v764
          %v766 = vld [vmem:[#allocation2] sm:$0xff]
          %v767 = vld [vmem:[#allocation2 + $0x8] sm:$0xff]
          %v768 = vld [vmem:[#allocation2 + $0x10] sm:$0xff]
          %v769 = vld [vmem:[#allocation2 + $0x18] sm:$0xff]
          %v770 = vld [vmem:[%s635] sm:$0xff]
          %v771 = vld [vmem:[%s635 + $0x8] sm:$0xff]
          %v772 = vld [vmem:[%s635 + $0x10] sm:$0xff]
          %v773 = vld [vmem:[%s635 + $0x18] sm:$0xff]
          %v774 = vld [vmem:[%s635 + $0x20] sm:$0xff]
          %v775 = vld [vmem:[%s635 + $0x28] sm:$0xff]
          %v776 = vld [vmem:[%s635 + $0x30] sm:$0xff]
          %v777 = vld [vmem:[%s635 + $0x38] sm:$0xff]
          %v778 = vld [vmem:[%s635 + $0x40] sm:$0xff]
          %v779 = vld [vmem:[%s635 + $0x48] sm:$0xff]
          %v780 = vld [vmem:[%s635 + $0x50] sm:$0xff]
          %v781 = vld [vmem:[%s635 + $0x58] sm:$0xff]
          %v782 = vld [vmem:[%s635 + $0x60] sm:$0xff]
          %v783 = vld [vmem:[%s635 + $0x68] sm:$0xff]
          %v784 = vld [vmem:[%s635 + $0x70] sm:$0xff]
          %v785 = vld [vmem:[%s635 + $0x78] sm:$0xff]
          %v786 = vld [vmem:[%s635 + $0x80] sm:$0xff]
          %v787 = vld [vmem:[%s635 + $0x88] sm:$0xff]
          %v788 = vld [vmem:[%s635 + $0x90] sm:$0xff]
          %v789 = vld [vmem:[%s635 + $0x98] sm:$0xff]
          %v790 = vld [vmem:[%s635 + $0xa0] sm:$0xff]
          %v791 = vld [vmem:[%s635 + $0xa8] sm:$0xff]
          %v792 = vld [vmem:[%s635 + $0xb0] sm:$0xff]
          %v793 = vld [vmem:[%s635 + $0xb8] sm:$0xff]
          %v794 = vld [vmem:[%s635 + $0xc0] sm:$0xff]
          %v795 = vld [vmem:[%s635 + $0xc8] sm:$0xff]
          %v796 = vld [vmem:[%s635 + $0xd0] sm:$0xff]
          %v797 = vld [vmem:[%s635 + $0xd8] sm:$0xff]
          %v798 = vld [vmem:[%s635 + $0xe0] sm:$0xff]
          %v799 = vld [vmem:[%s635 + $0xe8] sm:$0xff]
          %v800 = vld [vmem:[%s635 + $0xf0] sm:$0xff]
          %v801 = vld [vmem:[%s635 + $0xf8] sm:$0xff]
          %v834 = vunpack.c.l.b16 %v770
          %v835 = vunpack.c.h.b16 %v770
          %v836 = vunpack.c.l.b16 %v771
          %v837 = vunpack.c.h.b16 %v771
          %v838 = vunpack.c.l.b16 %v772
          %v839 = vunpack.c.h.b16 %v772
          %v840 = vunpack.c.l.b16 %v773
          %v841 = vunpack.c.h.b16 %v773
          %v842 = vunpack.c.l.b16 %v774
          %v843 = vunpack.c.h.b16 %v774
          %v844 = vunpack.c.l.b16 %v775
          %v845 = vunpack.c.h.b16 %v775
          %v846 = vunpack.c.l.b16 %v776
          %v847 = vunpack.c.h.b16 %v776
          %v848 = vunpack.c.l.b16 %v777
          %v849 = vunpack.c.h.b16 %v777
          %v850 = vunpack.c.l.b16 %v778
          %v851 = vunpack.c.h.b16 %v778
          %v852 = vunpack.c.l.b16 %v779
          %v853 = vunpack.c.h.b16 %v779
          %v854 = vunpack.c.l.b16 %v780
          %v855 = vunpack.c.h.b16 %v780
          %v856 = vunpack.c.l.b16 %v781
          %v857 = vunpack.c.h.b16 %v781
          %v858 = vunpack.c.l.b16 %v782
          %v859 = vunpack.c.h.b16 %v782
          %v860 = vunpack.c.l.b16 %v783
          %v861 = vunpack.c.h.b16 %v783
          %v862 = vunpack.c.l.b16 %v784
          %v863 = vunpack.c.h.b16 %v784
          %v864 = vunpack.c.l.b16 %v785
          %v865 = vunpack.c.h.b16 %v785
          %v866 = vunpack.c.l.b16 %v786
          %v867 = vunpack.c.h.b16 %v786
          %v868 = vunpack.c.l.b16 %v787
          %v869 = vunpack.c.h.b16 %v787
          %v870 = vunpack.c.l.b16 %v788
          %v871 = vunpack.c.h.b16 %v788
          %v872 = vunpack.c.l.b16 %v789
          %v873 = vunpack.c.h.b16 %v789
          %v874 = vunpack.c.l.b16 %v790
          %v875 = vunpack.c.h.b16 %v790
          %v876 = vunpack.c.l.b16 %v791
          %v877 = vunpack.c.h.b16 %v791
          %v878 = vunpack.c.l.b16 %v792
          %v879 = vunpack.c.h.b16 %v792
          %v880 = vunpack.c.l.b16 %v793
          %v881 = vunpack.c.h.b16 %v793
          %v882 = vunpack.c.l.b16 %v794
          %v883 = vunpack.c.h.b16 %v794
          %v884 = vunpack.c.l.b16 %v795
          %v885 = vunpack.c.h.b16 %v795
          %v886 = vunpack.c.l.b16 %v796
          %v887 = vunpack.c.h.b16 %v796
          %v888 = vunpack.c.l.b16 %v797
          %v889 = vunpack.c.h.b16 %v797
          %v890 = vunpack.c.l.b16 %v798
          %v891 = vunpack.c.h.b16 %v798
          %v892 = vunpack.c.l.b16 %v799
          %v893 = vunpack.c.h.b16 %v799
          %v894 = vunpack.c.l.b16 %v800
          %v895 = vunpack.c.h.b16 %v800
          %v896 = vunpack.c.l.b16 %v801
          %v897 = vunpack.c.h.b16 %v801
          %v898 = vpack.c.b16 %v838, %v834
          %v899 = vpack.c.b16 %v839, %v835
          %v900 = vpack.c.b16 %v840, %v836
          %v901 = vpack.c.b16 %v841, %v837
          %v902 = vpack.c.b16 %v846, %v842
          %v903 = vpack.c.b16 %v847, %v843
          %v904 = vpack.c.b16 %v848, %v844
          %v905 = vpack.c.b16 %v849, %v845
          %v906 = vpack.c.b16 %v854, %v850
          %v907 = vpack.c.b16 %v855, %v851
          %v908 = vpack.c.b16 %v856, %v852
          %v909 = vpack.c.b16 %v857, %v853
          %v910 = vpack.c.b16 %v862, %v858
          %v911 = vpack.c.b16 %v863, %v859
          %v912 = vpack.c.b16 %v864, %v860
          %v913 = vpack.c.b16 %v865, %v861
          %v914 = vpack.c.b16 %v870, %v866
          %v915 = vpack.c.b16 %v871, %v867
          %v916 = vpack.c.b16 %v872, %v868
          %v917 = vpack.c.b16 %v873, %v869
          %v918 = vpack.c.b16 %v878, %v874
          %v919 = vpack.c.b16 %v879, %v875
          %v920 = vpack.c.b16 %v880, %v876
          %v921 = vpack.c.b16 %v881, %v877
          %v922 = vpack.c.b16 %v886, %v882
          %v923 = vpack.c.b16 %v887, %v883
          %v924 = vpack.c.b16 %v888, %v884
          %v925 = vpack.c.b16 %v889, %v885
          %v926 = vpack.c.b16 %v894, %v890
          %v927 = vpack.c.b16 %v895, %v891
          %v928 = vpack.c.b16 %v896, %v892
          %v929 = vpack.c.b16 %v897, %v893
          %962 = vmatpush.bf16.msra.mxu0 %v926
          %963 = vmatpush.bf16.msra.mxu0 %v922
          %964 = vmatpush.bf16.msra.mxu0 %v918
          %965 = vmatpush.bf16.msra.mxu0 %v914
          %966 = vmatpush.bf16.msra.mxu0 %v910
          %967 = vmatpush.bf16.msra.mxu0 %v906
          %968 = vmatpush.bf16.msra.mxu0 %v902
          %969 = vmatpush.bf16.msra.mxu0 %v898
          %970 = vmatmul.bf16.gmra.mxu0 %v765
          %v971 = vpop.f32.mrf.mxu0
          %v972 = vadd.f32 0.0, %v971
          %v973 = vpop.f32.mrf.mxu0
          %974 = vdwg.mxu0
          %975 = vmatpush.bf16.msra.mxu0 %v927
          %976 = vmatpush.bf16.msra.mxu0 %v923
          %977 = vmatpush.bf16.msra.mxu0 %v919
          %978 = vmatpush.bf16.msra.mxu0 %v915
          %979 = vmatpush.bf16.msra.mxu0 %v911
          %980 = vmatpush.bf16.msra.mxu0 %v907
          %981 = vmatpush.bf16.msra.mxu0 %v903
          %982 = vmatpush.bf16.msra.mxu0 %v899
          %983 = vmatmul.bf16.gmra.mxu0 %v765
          %v984 = vpop.f32.mrf.mxu0
          %v985 = vadd.f32 0.0, %v984
          %v986 = vpop.f32.mrf.mxu0
          %987 = vdwg.mxu0
          %988 = vmatpush.bf16.msra.mxu0 %v928
          %989 = vmatpush.bf16.msra.mxu0 %v924
          %990 = vmatpush.bf16.msra.mxu0 %v920
          %991 = vmatpush.bf16.msra.mxu0 %v916
          %992 = vmatpush.bf16.msra.mxu0 %v912
          %993 = vmatpush.bf16.msra.mxu0 %v908
          %994 = vmatpush.bf16.msra.mxu0 %v904
          %995 = vmatpush.bf16.msra.mxu0 %v900
          %996 = vmatmul.bf16.gmra.mxu0 %v765
          %v997 = vpop.f32.mrf.mxu0
          %v998 = vadd.f32 0.0, %v997
          %v999 = vpop.f32.mrf.mxu0
          %1000 = vdwg.mxu0
          %1001 = vmatpush.bf16.msra.mxu0 %v929
          %1002 = vmatpush.bf16.msra.mxu0 %v925
          %1003 = vmatpush.bf16.msra.mxu0 %v921
          %1004 = vmatpush.bf16.msra.mxu0 %v917
          %1005 = vmatpush.bf16.msra.mxu0 %v913
          %1006 = vmatpush.bf16.msra.mxu0 %v909
          %1007 = vmatpush.bf16.msra.mxu0 %v905
          %1008 = vmatpush.bf16.msra.mxu0 %v901
          %1009 = vmatmul.bf16.gmra.mxu0 %v765
          %v1010 = vpop.f32.mrf.mxu0
          %v1011 = vadd.f32 0.0, %v1010
          %v1012 = vpop.f32.mrf.mxu0
          %1013 = vdwg.mxu0
          %v1014 = vadd.f32 %v766, %v972
          %v1015 = vadd.f32 %v767, %v985
          %v1016 = vadd.f32 %v768, %v998
          %v1017 = vadd.f32 %v769, %v1011
          %1018 = vst [vmem:[#allocation2] sm:$0xff] %v1014
          %1019 = vst [vmem:[#allocation2 + $0x8] sm:$0xff] %v1015
          %1020 = vst [vmem:[#allocation2 + $0x10] sm:$0xff] %v1016
          %1021 = vst [vmem:[#allocation2 + $0x18] sm:$0xff] %v1017
        $region116: #{tpu_custom_call.1} parent=71 // pred_fallthru
          _
        %p1022 = scmp.eq.s32.totalorder %s47, 1
        %p1023 = pnand %p751, %p1022
        %p1024 = pneg %p1023
        // Predicated region
        $region117: #{tpu_custom_call.1} parent=71 // pred_check
          _
        $region118: #{tpu_custom_call.1} parent=71 // pred_check_branch
          %1026 = sbr.rel (%p1023) target = $region120
        $region119: #{tpu_custom_call.1} parent=71 // pred_region
          %v1027 = vld [vmem:[#allocation2] sm:$0xff]
          %v1028 = vld [vmem:[#allocation2 + $0x8] sm:$0xff]
          %v1029 = vld [vmem:[#allocation2 + $0x10] sm:$0xff]
          %v1030 = vld [vmem:[#allocation2 + $0x18] sm:$0xff]
          %v1031 = vld [vmem:[#allocation9] sm:$0xf]
          %v1033 = vperm.slane %v1031, 0
          %v1034 = vperm.slane %v1031, 1
          %v1035 = vperm.slane %v1031, 2
          %v1036 = vperm.slane %v1031, 3
          %v1041 = vadd.f32 %v1027, %v1033
          %v1042 = vadd.f32 %v1028, %v1034
          %v1043 = vadd.f32 %v1029, %v1035
          %v1044 = vadd.f32 %v1030, %v1036
          %vm1045 = vcmp.ge.f32.partialorder %v1041, 0.0
          %vm1046 = vcmp.ge.f32.partialorder %v1042, 0.0
          %vm1047 = vcmp.ge.f32.partialorder %v1043, 0.0
          %vm1048 = vcmp.ge.f32.partialorder %v1044, 0.0
          %v1049 = vmul.f32 %v1041, 0.01
          %v1050 = vmul.f32 %v1042, 0.01
          %v1051 = vmul.f32 %v1043, 0.01
          %v1052 = vmul.f32 %v1044, 0.01
          %v1053 = vsel %vm1045, %v1041, %v1049
          %v1054 = vsel %vm1046, %v1042, %v1050
          %v1055 = vsel %vm1047, %v1043, %v1051
          %v1056 = vsel %vm1048, %v1044, %v1052
          %v1057 = vpack.c.bf16 %v1053, %v1053
          %v1058 = vpack.c.bf16 %v1054, %v1054
          %v1059 = vpack.c.bf16 %v1055, %v1055
          %v1060 = vpack.c.bf16 %v1056, %v1056
          %v1061 = vld [vmem:[#allocation10] sm:$0xff]
          %v1062 = vld [vmem:[#allocation10 + $0x8] sm:$0xff]
          %v1063 = vld [vmem:[#allocation10 + $0x10] sm:$0xff]
          %v1064 = vld [vmem:[#allocation10 + $0x18] sm:$0xff]
          %v1065 = vld [vmem:[#allocation10 + $0x20] sm:$0xff]
          %v1066 = vld [vmem:[#allocation10 + $0x28] sm:$0xff]
          %v1067 = vld [vmem:[#allocation10 + $0x30] sm:$0xff]
          %v1068 = vld [vmem:[#allocation10 + $0x38] sm:$0xff]
          %v1069 = vld [vmem:[#allocation10 + $0x40] sm:$0xff]
          %v1070 = vld [vmem:[#allocation10 + $0x48] sm:$0xff]
          %v1071 = vld [vmem:[#allocation10 + $0x50] sm:$0xff]
          %v1072 = vld [vmem:[#allocation10 + $0x58] sm:$0xff]
          %v1073 = vld [vmem:[#allocation10 + $0x60] sm:$0xff]
          %v1074 = vld [vmem:[#allocation10 + $0x68] sm:$0xff]
          %v1075 = vld [vmem:[#allocation10 + $0x70] sm:$0xff]
          %v1076 = vld [vmem:[#allocation10 + $0x78] sm:$0xff]
          %v1077 = vld [vmem:[#allocation10 + $0x80] sm:$0xff]
          %v1078 = vld [vmem:[#allocation10 + $0x88] sm:$0xff]
          %v1079 = vld [vmem:[#allocation10 + $0x90] sm:$0xff]
          %v1080 = vld [vmem:[#allocation10 + $0x98] sm:$0xff]
          %v1081 = vld [vmem:[#allocation10 + $0xa0] sm:$0xff]
          %v1082 = vld [vmem:[#allocation10 + $0xa8] sm:$0xff]
          %v1083 = vld [vmem:[#allocation10 + $0xb0] sm:$0xff]
          %v1084 = vld [vmem:[#allocation10 + $0xb8] sm:$0xff]
          %v1085 = vld [vmem:[#allocation10 + $0xc0] sm:$0xff]
          %v1086 = vld [vmem:[#allocation10 + $0xc8] sm:$0xff]
          %v1087 = vld [vmem:[#allocation10 + $0xd0] sm:$0xff]
          %v1088 = vld [vmem:[#allocation10 + $0xd8] sm:$0xff]
          %v1089 = vld [vmem:[#allocation10 + $0xe0] sm:$0xff]
          %v1090 = vld [vmem:[#allocation10 + $0xe8] sm:$0xff]
          %v1091 = vld [vmem:[#allocation10 + $0xf0] sm:$0xff]
          %v1092 = vld [vmem:[#allocation10 + $0xf8] sm:$0xff]
          %v1093 = vld [vmem:[#allocation10 + $0x100] sm:$0xff]
          %v1094 = vld [vmem:[#allocation10 + $0x108] sm:$0xff]
          %v1095 = vld [vmem:[#allocation10 + $0x110] sm:$0xff]
          %v1096 = vld [vmem:[#allocation10 + $0x118] sm:$0xff]
          %v1097 = vld [vmem:[#allocation10 + $0x120] sm:$0xff]
          %v1098 = vld [vmem:[#allocation10 + $0x128] sm:$0xff]
          %v1099 = vld [vmem:[#allocation10 + $0x130] sm:$0xff]
          %v1100 = vld [vmem:[#allocation10 + $0x138] sm:$0xff]
          %v1101 = vld [vmem:[#allocation10 + $0x140] sm:$0xff]
          %v1102 = vld [vmem:[#allocation10 + $0x148] sm:$0xff]
          %v1103 = vld [vmem:[#allocation10 + $0x150] sm:$0xff]
          %v1104 = vld [vmem:[#allocation10 + $0x158] sm:$0xff]
          %v1105 = vld [vmem:[#allocation10 + $0x160] sm:$0xff]
          %v1106 = vld [vmem:[#allocation10 + $0x168] sm:$0xff]
          %v1107 = vld [vmem:[#allocation10 + $0x170] sm:$0xff]
          %v1108 = vld [vmem:[#allocation10 + $0x178] sm:$0xff]
          %v1109 = vld [vmem:[#allocation10 + $0x180] sm:$0xff]
          %v1110 = vld [vmem:[#allocation10 + $0x188] sm:$0xff]
          %v1111 = vld [vmem:[#allocation10 + $0x190] sm:$0xff]
          %v1112 = vld [vmem:[#allocation10 + $0x198] sm:$0xff]
          %v1113 = vld [vmem:[#allocation10 + $0x1a0] sm:$0xff]
          %v1114 = vld [vmem:[#allocation10 + $0x1a8] sm:$0xff]
          %v1115 = vld [vmem:[#allocation10 + $0x1b0] sm:$0xff]
          %v1116 = vld [vmem:[#allocation10 + $0x1b8] sm:$0xff]
          %v1117 = vld [vmem:[#allocation10 + $0x1c0] sm:$0xff]
          %v1118 = vld [vmem:[#allocation10 + $0x1c8] sm:$0xff]
          %v1119 = vld [vmem:[#allocation10 + $0x1d0] sm:$0xff]
          %v1120 = vld [vmem:[#allocation10 + $0x1d8] sm:$0xff]
          %v1121 = vld [vmem:[#allocation10 + $0x1e0] sm:$0xff]
          %v1122 = vld [vmem:[#allocation10 + $0x1e8] sm:$0xff]
          %v1123 = vld [vmem:[#allocation10 + $0x1f0] sm:$0xff]
          %v1124 = vld [vmem:[#allocation10 + $0x1f8] sm:$0xff]
          %v1125 = vld [vmem:[%s4] sm:$0x3]
          %v1127 = vperm.slane %v1125, 0
          %v1128 = vperm.slane %v1125, 1
          %v1195 = vunpack.c.l.b16 %v1061
          %v1196 = vunpack.c.h.b16 %v1061
          %v1197 = vunpack.c.l.b16 %v1062
          %v1198 = vunpack.c.h.b16 %v1062
          %v1199 = vunpack.c.l.b16 %v1063
          %v1200 = vunpack.c.h.b16 %v1063
          %v1201 = vunpack.c.l.b16 %v1064
          %v1202 = vunpack.c.h.b16 %v1064
          %v1203 = vunpack.c.l.b16 %v1065
          %v1204 = vunpack.c.h.b16 %v1065
          %v1205 = vunpack.c.l.b16 %v1066
          %v1206 = vunpack.c.h.b16 %v1066
          %v1207 = vunpack.c.l.b16 %v1067
          %v1208 = vunpack.c.h.b16 %v1067
          %v1209 = vunpack.c.l.b16 %v1068
          %v1210 = vunpack.c.h.b16 %v1068
          %v1211 = vunpack.c.l.b16 %v1069
          %v1212 = vunpack.c.h.b16 %v1069
          %v1213 = vunpack.c.l.b16 %v1070
          %v1214 = vunpack.c.h.b16 %v1070
          %v1215 = vunpack.c.l.b16 %v1071
          %v1216 = vunpack.c.h.b16 %v1071
          %v1217 = vunpack.c.l.b16 %v1072
          %v1218 = vunpack.c.h.b16 %v1072
          %v1219 = vunpack.c.l.b16 %v1073
          %v1220 = vunpack.c.h.b16 %v1073
          %v1221 = vunpack.c.l.b16 %v1074
          %v1222 = vunpack.c.h.b16 %v1074
          %v1223 = vunpack.c.l.b16 %v1075
          %v1224 = vunpack.c.h.b16 %v1075
          %v1225 = vunpack.c.l.b16 %v1076
          %v1226 = vunpack.c.h.b16 %v1076
          %v1227 = vunpack.c.l.b16 %v1077
          %v1228 = vunpack.c.h.b16 %v1077
          %v1229 = vunpack.c.l.b16 %v1078
          %v1230 = vunpack.c.h.b16 %v1078
          %v1231 = vunpack.c.l.b16 %v1079
          %v1232 = vunpack.c.h.b16 %v1079
          %v1233 = vunpack.c.l.b16 %v1080
          %v1234 = vunpack.c.h.b16 %v1080
          %v1235 = vunpack.c.l.b16 %v1081
          %v1236 = vunpack.c.h.b16 %v1081
          %v1237 = vunpack.c.l.b16 %v1082
          %v1238 = vunpack.c.h.b16 %v1082
          %v1239 = vunpack.c.l.b16 %v1083
          %v1240 = vunpack.c.h.b16 %v1083
          %v1241 = vunpack.c.l.b16 %v1084
          %v1242 = vunpack.c.h.b16 %v1084
          %v1243 = vunpack.c.l.b16 %v1085
          %v1244 = vunpack.c.h.b16 %v1085
          %v1245 = vunpack.c.l.b16 %v1086
          %v1246 = vunpack.c.h.b16 %v1086
          %v1247 = vunpack.c.l.b16 %v1087
          %v1248 = vunpack.c.h.b16 %v1087
          %v1249 = vunpack.c.l.b16 %v1088
          %v1250 = vunpack.c.h.b16 %v1088
          %v1251 = vunpack.c.l.b16 %v1089
          %v1252 = vunpack.c.h.b16 %v1089
          %v1253 = vunpack.c.l.b16 %v1090
          %v1254 = vunpack.c.h.b16 %v1090
          %v1255 = vunpack.c.l.b16 %v1091
          %v1256 = vunpack.c.h.b16 %v1091
          %v1257 = vunpack.c.l.b16 %v1092
          %v1258 = vunpack.c.h.b16 %v1092
          %v1259 = vunpack.c.l.b16 %v1093
          %v1260 = vunpack.c.h.b16 %v1093
          %v1261 = vunpack.c.l.b16 %v1094
          %v1262 = vunpack.c.h.b16 %v1094
          %v1263 = vunpack.c.l.b16 %v1095
          %v1264 = vunpack.c.h.b16 %v1095
          %v1265 = vunpack.c.l.b16 %v1096
          %v1266 = vunpack.c.h.b16 %v1096
          %v1267 = vunpack.c.l.b16 %v1097
          %v1268 = vunpack.c.h.b16 %v1097
          %v1269 = vunpack.c.l.b16 %v1098
          %v1270 = vunpack.c.h.b16 %v1098
          %v1271 = vunpack.c.l.b16 %v1099
          %v1272 = vunpack.c.h.b16 %v1099
          %v1273 = vunpack.c.l.b16 %v1100
          %v1274 = vunpack.c.h.b16 %v1100
          %v1275 = vunpack.c.l.b16 %v1101
          %v1276 = vunpack.c.h.b16 %v1101
          %v1277 = vunpack.c.l.b16 %v1102
          %v1278 = vunpack.c.h.b16 %v1102
          %v1279 = vunpack.c.l.b16 %v1103
          %v1280 = vunpack.c.h.b16 %v1103
          %v1281 = vunpack.c.l.b16 %v1104
          %v1282 = vunpack.c.h.b16 %v1104
          %v1283 = vunpack.c.l.b16 %v1105
          %v1284 = vunpack.c.h.b16 %v1105
          %v1285 = vunpack.c.l.b16 %v1106
          %v1286 = vunpack.c.h.b16 %v1106
          %v1287 = vunpack.c.l.b16 %v1107
          %v1288 = vunpack.c.h.b16 %v1107
          %v1289 = vunpack.c.l.b16 %v1108
          %v1290 = vunpack.c.h.b16 %v1108
          %v1291 = vunpack.c.l.b16 %v1109
          %v1292 = vunpack.c.h.b16 %v1109
          %v1293 = vunpack.c.l.b16 %v1110
          %v1294 = vunpack.c.h.b16 %v1110
          %v1295 = vunpack.c.l.b16 %v1111
          %v1296 = vunpack.c.h.b16 %v1111
          %v1297 = vunpack.c.l.b16 %v1112
          %v1298 = vunpack.c.h.b16 %v1112
          %v1299 = vunpack.c.l.b16 %v1113
          %v1300 = vunpack.c.h.b16 %v1113
          %v1301 = vunpack.c.l.b16 %v1114
          %v1302 = vunpack.c.h.b16 %v1114
          %v1303 = vunpack.c.l.b16 %v1115
          %v1304 = vunpack.c.h.b16 %v1115
          %v1305 = vunpack.c.l.b16 %v1116
          %v1306 = vunpack.c.h.b16 %v1116
          %v1307 = vunpack.c.l.b16 %v1117
          %v1308 = vunpack.c.h.b16 %v1117
          %v1309 = vunpack.c.l.b16 %v1118
          %v1310 = vunpack.c.h.b16 %v1118
          %v1311 = vunpack.c.l.b16 %v1119
          %v1312 = vunpack.c.h.b16 %v1119
          %v1313 = vunpack.c.l.b16 %v1120
          %v1314 = vunpack.c.h.b16 %v1120
          %v1315 = vunpack.c.l.b16 %v1121
          %v1316 = vunpack.c.h.b16 %v1121
          %v1317 = vunpack.c.l.b16 %v1122
          %v1318 = vunpack.c.h.b16 %v1122
          %v1319 = vunpack.c.l.b16 %v1123
          %v1320 = vunpack.c.h.b16 %v1123
          %v1321 = vunpack.c.l.b16 %v1124
          %v1322 = vunpack.c.h.b16 %v1124
          %v1323 = vpack.c.b16 %v1197, %v1195
          %v1324 = vpack.c.b16 %v1198, %v1196
          %v1325 = vpack.c.b16 %v1201, %v1199
          %v1326 = vpack.c.b16 %v1202, %v1200
          %v1327 = vpack.c.b16 %v1205, %v1203
          %v1328 = vpack.c.b16 %v1206, %v1204
          %v1329 = vpack.c.b16 %v1209, %v1207
          %v1330 = vpack.c.b16 %v1210, %v1208
          %v1331 = vpack.c.b16 %v1213, %v1211
          %v1332 = vpack.c.b16 %v1214, %v1212
          %v1333 = vpack.c.b16 %v1217, %v1215
          %v1334 = vpack.c.b16 %v1218, %v1216
          %v1335 = vpack.c.b16 %v1221, %v1219
          %v1336 = vpack.c.b16 %v1222, %v1220
          %v1337 = vpack.c.b16 %v1225, %v1223
          %v1338 = vpack.c.b16 %v1226, %v1224
          %v1339 = vpack.c.b16 %v1229, %v1227
          %v1340 = vpack.c.b16 %v1230, %v1228
          %v1341 = vpack.c.b16 %v1233, %v1231
          %v1342 = vpack.c.b16 %v1234, %v1232
          %v1343 = vpack.c.b16 %v1237, %v1235
          %v1344 = vpack.c.b16 %v1238, %v1236
          %v1345 = vpack.c.b16 %v1241, %v1239
          %v1346 = vpack.c.b16 %v1242, %v1240
          %v1347 = vpack.c.b16 %v1245, %v1243
          %v1348 = vpack.c.b16 %v1246, %v1244
          %v1349 = vpack.c.b16 %v1249, %v1247
          %v1350 = vpack.c.b16 %v1250, %v1248
          %v1351 = vpack.c.b16 %v1253, %v1251
          %v1352 = vpack.c.b16 %v1254, %v1252
          %v1353 = vpack.c.b16 %v1257, %v1255
          %v1354 = vpack.c.b16 %v1258, %v1256
          %v1355 = vpack.c.b16 %v1261, %v1259
          %v1356 = vpack.c.b16 %v1262, %v1260
          %v1357 = vpack.c.b16 %v1265, %v1263
          %v1358 = vpack.c.b16 %v1266, %v1264
          %v1359 = vpack.c.b16 %v1269, %v1267
          %v1360 = vpack.c.b16 %v1270, %v1268
          %v1361 = vpack.c.b16 %v1273, %v1271
          %v1362 = vpack.c.b16 %v1274, %v1272
          %v1363 = vpack.c.b16 %v1277, %v1275
          %v1364 = vpack.c.b16 %v1278, %v1276
          %v1365 = vpack.c.b16 %v1281, %v1279
          %v1366 = vpack.c.b16 %v1282, %v1280
          %v1367 = vpack.c.b16 %v1285, %v1283
          %v1368 = vpack.c.b16 %v1286, %v1284
          %v1369 = vpack.c.b16 %v1289, %v1287
          %v1370 = vpack.c.b16 %v1290, %v1288
          %v1371 = vpack.c.b16 %v1293, %v1291
          %v1372 = vpack.c.b16 %v1294, %v1292
          %v1373 = vpack.c.b16 %v1297, %v1295
          %v1374 = vpack.c.b16 %v1298, %v1296
          %v1375 = vpack.c.b16 %v1301, %v1299
          %v1376 = vpack.c.b16 %v1302, %v1300
          %v1377 = vpack.c.b16 %v1305, %v1303
          %v1378 = vpack.c.b16 %v1306, %v1304
          %v1379 = vpack.c.b16 %v1309, %v1307
          %v1380 = vpack.c.b16 %v1310, %v1308
          %v1381 = vpack.c.b16 %v1313, %v1311
          %v1382 = vpack.c.b16 %v1314, %v1312
          %v1383 = vpack.c.b16 %v1317, %v1315
          %v1384 = vpack.c.b16 %v1318, %v1316
          %v1385 = vpack.c.b16 %v1321, %v1319
          %v1386 = vpack.c.b16 %v1322, %v1320
          %1451 = vmatpush.bf16.msra.mxu0 %v1337
          %1452 = vmatpush.bf16.msra.mxu0 %v1335
          %1453 = vmatpush.bf16.msra.mxu0 %v1333
          %1454 = vmatpush.bf16.msra.mxu0 %v1331
          %1455 = vmatpush.bf16.msra.mxu0 %v1329
          %1456 = vmatpush.bf16.msra.mxu0 %v1327
          %1457 = vmatpush.bf16.msra.mxu0 %v1325
          %1458 = vmatpush.bf16.msra.mxu0 %v1323
          %1459 = vmatmul.bf16.gmra.mxu0 %v1057
          %v1460 = vpop.f32.mrf.mxu0
          %v1461 = vadd.f32 %v1127, %v1460
          %v1462 = vpop.f32.mrf.mxu0
          %1463 = vdwg.mxu0
          %1464 = vmatpush.bf16.msra.mxu0 %v1353
          %1465 = vmatpush.bf16.msra.mxu0 %v1351
          %1466 = vmatpush.bf16.msra.mxu0 %v1349
          %1467 = vmatpush.bf16.msra.mxu0 %v1347
          %1468 = vmatpush.bf16.msra.mxu0 %v1345
          %1469 = vmatpush.bf16.msra.mxu0 %v1343
          %1470 = vmatpush.bf16.msra.mxu0 %v1341
          %1471 = vmatpush.bf16.msra.mxu0 %v1339
          %1472 = vmatmul.bf16.gmra.mxu0 %v1058
          %v1473 = vpop.f32.mrf.mxu0
          %v1474 = vadd.f32 %v1461, %v1473
          %v1475 = vpop.f32.mrf.mxu0
          %1476 = vdwg.mxu0
          %1477 = vmatpush.bf16.msra.mxu0 %v1369
          %1478 = vmatpush.bf16.msra.mxu0 %v1367
          %1479 = vmatpush.bf16.msra.mxu0 %v1365
          %1480 = vmatpush.bf16.msra.mxu0 %v1363
          %1481 = vmatpush.bf16.msra.mxu0 %v1361
          %1482 = vmatpush.bf16.msra.mxu0 %v1359
          %1483 = vmatpush.bf16.msra.mxu0 %v1357
          %1484 = vmatpush.bf16.msra.mxu0 %v1355
          %1485 = vmatmul.bf16.gmra.mxu0 %v1059
          %v1486 = vpop.f32.mrf.mxu0
          %v1487 = vadd.f32 %v1474, %v1486
          %v1488 = vpop.f32.mrf.mxu0
          %1489 = vdwg.mxu0
          %1490 = vmatpush.bf16.msra.mxu0 %v1385
          %1491 = vmatpush.bf16.msra.mxu0 %v1383
          %1492 = vmatpush.bf16.msra.mxu0 %v1381
          %1493 = vmatpush.bf16.msra.mxu0 %v1379
          %1494 = vmatpush.bf16.msra.mxu0 %v1377
          %1495 = vmatpush.bf16.msra.mxu0 %v1375
          %1496 = vmatpush.bf16.msra.mxu0 %v1373
          %1497 = vmatpush.bf16.msra.mxu0 %v1371
          %1498 = vmatmul.bf16.gmra.mxu0 %v1060
          %v1499 = vpop.f32.mrf.mxu0
          %v1500 = vadd.f32 %v1487, %v1499
          %v1501 = vpop.f32.mrf.mxu0
          %1502 = vdwg.mxu0
          %1503 = vmatpush.bf16.msra.mxu0 %v1338
          %1504 = vmatpush.bf16.msra.mxu0 %v1336
          %1505 = vmatpush.bf16.msra.mxu0 %v1334
          %1506 = vmatpush.bf16.msra.mxu0 %v1332
          %1507 = vmatpush.bf16.msra.mxu0 %v1330
          %1508 = vmatpush.bf16.msra.mxu0 %v1328
          %1509 = vmatpush.bf16.msra.mxu0 %v1326
          %1510 = vmatpush.bf16.msra.mxu0 %v1324
          %1511 = vmatmul.bf16.gmra.mxu0 %v1057
          %v1512 = vpop.f32.mrf.mxu0
          %v1513 = vadd.f32 %v1128, %v1512
          %v1514 = vpop.f32.mrf.mxu0
          %1515 = vdwg.mxu0
          %1516 = vmatpush.bf16.msra.mxu0 %v1354
          %1517 = vmatpush.bf16.msra.mxu0 %v1352
          %1518 = vmatpush.bf16.msra.mxu0 %v1350
          %1519 = vmatpush.bf16.msra.mxu0 %v1348
          %1520 = vmatpush.bf16.msra.mxu0 %v1346
          %1521 = vmatpush.bf16.msra.mxu0 %v1344
          %1522 = vmatpush.bf16.msra.mxu0 %v1342
          %1523 = vmatpush.bf16.msra.mxu0 %v1340
          %1524 = vmatmul.bf16.gmra.mxu0 %v1058
          %v1525 = vpop.f32.mrf.mxu0
          %v1526 = vadd.f32 %v1513, %v1525
          %v1527 = vpop.f32.mrf.mxu0
          %1528 = vdwg.mxu0
          %1529 = vmatpush.bf16.msra.mxu0 %v1370
          %1530 = vmatpush.bf16.msra.mxu0 %v1368
          %1531 = vmatpush.bf16.msra.mxu0 %v1366
          %1532 = vmatpush.bf16.msra.mxu0 %v1364
          %1533 = vmatpush.bf16.msra.mxu0 %v1362
          %1534 = vmatpush.bf16.msra.mxu0 %v1360
          %1535 = vmatpush.bf16.msra.mxu0 %v1358
          %1536 = vmatpush.bf16.msra.mxu0 %v1356
          %1537 = vmatmul.bf16.gmra.mxu0 %v1059
          %v1538 = vpop.f32.mrf.mxu0
          %v1539 = vadd.f32 %v1526, %v1538
          %v1540 = vpop.f32.mrf.mxu0
          %1541 = vdwg.mxu0
          %1542 = vmatpush.bf16.msra.mxu0 %v1386
          %1543 = vmatpush.bf16.msra.mxu0 %v1384
          %1544 = vmatpush.bf16.msra.mxu0 %v1382
          %1545 = vmatpush.bf16.msra.mxu0 %v1380
          %1546 = vmatpush.bf16.msra.mxu0 %v1378
          %1547 = vmatpush.bf16.msra.mxu0 %v1376
          %1548 = vmatpush.bf16.msra.mxu0 %v1374
          %1549 = vmatpush.bf16.msra.mxu0 %v1372
          %1550 = vmatmul.bf16.gmra.mxu0 %v1060
          %v1551 = vpop.f32.mrf.mxu0
          %v1552 = vadd.f32 %v1539, %v1551
          %v1553 = vpop.f32.mrf.mxu0
          %1554 = vdwg.mxu0
          %vm1555 = vcmp.ge.f32.partialorder %v1500, 0.0
          %vm1556 = vcmp.ge.f32.partialorder %v1552, 0.0
          %v1557 = vmul.f32 %v1500, 0.01
          %v1558 = vmul.f32 %v1552, 0.01
          %v1559 = vsel %vm1555, %v1500, %v1557
          %v1560 = vsel %vm1556, %v1552, %v1558
          %v1561 = vpack.c.bf16 %v1559, %v1559
          %v1562 = vpack.c.bf16 %v1560, %v1560
          %v1563 = vld [vmem:[#allocation12] sm:$0xff]
          %v1564 = vld [vmem:[#allocation12 + $0x8] sm:$0xff]
          %v1565 = vld [vmem:[#allocation12 + $0x10] sm:$0xff]
          %v1566 = vld [vmem:[#allocation12 + $0x18] sm:$0xff]
          %v1567 = vld [vmem:[#allocation12 + $0x20] sm:$0xff]
          %v1568 = vld [vmem:[#allocation12 + $0x28] sm:$0xff]
          %v1569 = vld [vmem:[#allocation12 + $0x30] sm:$0xff]
          %v1570 = vld [vmem:[#allocation12 + $0x38] sm:$0xff]
          %v1571 = vld [vmem:[#allocation12 + $0x40] sm:$0xff]
          %v1572 = vld [vmem:[#allocation12 + $0x48] sm:$0xff]
          %v1573 = vld [vmem:[#allocation12 + $0x50] sm:$0xff]
          %v1574 = vld [vmem:[#allocation12 + $0x58] sm:$0xff]
          %v1575 = vld [vmem:[#allocation12 + $0x60] sm:$0xff]
          %v1576 = vld [vmem:[#allocation12 + $0x68] sm:$0xff]
          %v1577 = vld [vmem:[#allocation12 + $0x70] sm:$0xff]
          %v1578 = vld [vmem:[#allocation12 + $0x78] sm:$0xff]
          %v1579 = vld [vmem:[#allocation12 + $0x80] sm:$0xff]
          %v1580 = vld [vmem:[#allocation12 + $0x88] sm:$0xff]
          %v1581 = vld [vmem:[#allocation12 + $0x90] sm:$0xff]
          %v1582 = vld [vmem:[#allocation12 + $0x98] sm:$0xff]
          %v1583 = vld [vmem:[#allocation12 + $0xa0] sm:$0xff]
          %v1584 = vld [vmem:[#allocation12 + $0xa8] sm:$0xff]
          %v1585 = vld [vmem:[#allocation12 + $0xb0] sm:$0xff]
          %v1586 = vld [vmem:[#allocation12 + $0xb8] sm:$0xff]
          %v1587 = vld [vmem:[#allocation12 + $0xc0] sm:$0xff]
          %v1588 = vld [vmem:[#allocation12 + $0xc8] sm:$0xff]
          %v1589 = vld [vmem:[#allocation12 + $0xd0] sm:$0xff]
          %v1590 = vld [vmem:[#allocation12 + $0xd8] sm:$0xff]
          %v1591 = vld [vmem:[#allocation12 + $0xe0] sm:$0xff]
          %v1592 = vld [vmem:[#allocation12 + $0xe8] sm:$0xff]
          %v1593 = vld [vmem:[#allocation12 + $0xf0] sm:$0xff]
          %v1594 = vld [vmem:[#allocation12 + $0xf8] sm:$0xff]
          %v1595 = vld [vmem:[#allocation13] sm:$0x3]
          %v1597 = vperm.slane %v1595, 0
          %v1598 = vperm.slane %v1595, 1
          %v1633 = vunpack.c.l.b16 %v1563
          %v1634 = vunpack.c.h.b16 %v1563
          %v1635 = vunpack.c.l.b16 %v1564
          %v1636 = vunpack.c.h.b16 %v1564
          %v1637 = vunpack.c.l.b16 %v1565
          %v1638 = vunpack.c.h.b16 %v1565
          %v1639 = vunpack.c.l.b16 %v1566
          %v1640 = vunpack.c.h.b16 %v1566
          %v1641 = vunpack.c.l.b16 %v1567
          %v1642 = vunpack.c.h.b16 %v1567
          %v1643 = vunpack.c.l.b16 %v1568
          %v1644 = vunpack.c.h.b16 %v1568
          %v1645 = vunpack.c.l.b16 %v1569
          %v1646 = vunpack.c.h.b16 %v1569
          %v1647 = vunpack.c.l.b16 %v1570
          %v1648 = vunpack.c.h.b16 %v1570
          %v1649 = vunpack.c.l.b16 %v1571
          %v1650 = vunpack.c.h.b16 %v1571
          %v1651 = vunpack.c.l.b16 %v1572
          %v1652 = vunpack.c.h.b16 %v1572
          %v1653 = vunpack.c.l.b16 %v1573
          %v1654 = vunpack.c.h.b16 %v1573
          %v1655 = vunpack.c.l.b16 %v1574
          %v1656 = vunpack.c.h.b16 %v1574
          %v1657 = vunpack.c.l.b16 %v1575
          %v1658 = vunpack.c.h.b16 %v1575
          %v1659 = vunpack.c.l.b16 %v1576
          %v1660 = vunpack.c.h.b16 %v1576
          %v1661 = vunpack.c.l.b16 %v1577
          %v1662 = vunpack.c.h.b16 %v1577
          %v1663 = vunpack.c.l.b16 %v1578
          %v1664 = vunpack.c.h.b16 %v1578
          %v1665 = vunpack.c.l.b16 %v1579
          %v1666 = vunpack.c.h.b16 %v1579
          %v1667 = vunpack.c.l.b16 %v1580
          %v1668 = vunpack.c.h.b16 %v1580
          %v1669 = vunpack.c.l.b16 %v1581
          %v1670 = vunpack.c.h.b16 %v1581
          %v1671 = vunpack.c.l.b16 %v1582
          %v1672 = vunpack.c.h.b16 %v1582
          %v1673 = vunpack.c.l.b16 %v1583
          %v1674 = vunpack.c.h.b16 %v1583
          %v1675 = vunpack.c.l.b16 %v1584
          %v1676 = vunpack.c.h.b16 %v1584
          %v1677 = vunpack.c.l.b16 %v1585
          %v1678 = vunpack.c.h.b16 %v1585
          %v1679 = vunpack.c.l.b16 %v1586
          %v1680 = vunpack.c.h.b16 %v1586
          %v1681 = vunpack.c.l.b16 %v1587
          %v1682 = vunpack.c.h.b16 %v1587
          %v1683 = vunpack.c.l.b16 %v1588
          %v1684 = vunpack.c.h.b16 %v1588
          %v1685 = vunpack.c.l.b16 %v1589
          %v1686 = vunpack.c.h.b16 %v1589
          %v1687 = vunpack.c.l.b16 %v1590
          %v1688 = vunpack.c.h.b16 %v1590
          %v1689 = vunpack.c.l.b16 %v1591
          %v1690 = vunpack.c.h.b16 %v1591
          %v1691 = vunpack.c.l.b16 %v1592
          %v1692 = vunpack.c.h.b16 %v1592
          %v1693 = vunpack.c.l.b16 %v1593
          %v1694 = vunpack.c.h.b16 %v1593
          %v1695 = vunpack.c.l.b16 %v1594
          %v1696 = vunpack.c.h.b16 %v1594
          %v1697 = vpack.c.b16 %v1635, %v1633
          %v1698 = vpack.c.b16 %v1636, %v1634
          %v1699 = vpack.c.b16 %v1639, %v1637
          %v1700 = vpack.c.b16 %v1640, %v1638
          %v1701 = vpack.c.b16 %v1643, %v1641
          %v1702 = vpack.c.b16 %v1644, %v1642
          %v1703 = vpack.c.b16 %v1647, %v1645
          %v1704 = vpack.c.b16 %v1648, %v1646
          %v1705 = vpack.c.b16 %v1651, %v1649
          %v1706 = vpack.c.b16 %v1652, %v1650
          %v1707 = vpack.c.b16 %v1655, %v1653
          %v1708 = vpack.c.b16 %v1656, %v1654
          %v1709 = vpack.c.b16 %v1659, %v1657
          %v1710 = vpack.c.b16 %v1660, %v1658
          %v1711 = vpack.c.b16 %v1663, %v1661
          %v1712 = vpack.c.b16 %v1664, %v1662
          %v1713 = vpack.c.b16 %v1667, %v1665
          %v1714 = vpack.c.b16 %v1668, %v1666
          %v1715 = vpack.c.b16 %v1671, %v1669
          %v1716 = vpack.c.b16 %v1672, %v1670
          %v1717 = vpack.c.b16 %v1675, %v1673
          %v1718 = vpack.c.b16 %v1676, %v1674
          %v1719 = vpack.c.b16 %v1679, %v1677
          %v1720 = vpack.c.b16 %v1680, %v1678
          %v1721 = vpack.c.b16 %v1683, %v1681
          %v1722 = vpack.c.b16 %v1684, %v1682
          %v1723 = vpack.c.b16 %v1687, %v1685
          %v1724 = vpack.c.b16 %v1688, %v1686
          %v1725 = vpack.c.b16 %v1691, %v1689
          %v1726 = vpack.c.b16 %v1692, %v1690
          %v1727 = vpack.c.b16 %v1695, %v1693
          %v1728 = vpack.c.b16 %v1696, %v1694
          %1761 = vmatpush.bf16.msra.mxu0 %v1711
          %1762 = vmatpush.bf16.msra.mxu0 %v1709
          %1763 = vmatpush.bf16.msra.mxu0 %v1707
          %1764 = vmatpush.bf16.msra.mxu0 %v1705
          %1765 = vmatpush.bf16.msra.mxu0 %v1703
          %1766 = vmatpush.bf16.msra.mxu0 %v1701
          %1767 = vmatpush.bf16.msra.mxu0 %v1699
          %1768 = vmatpush.bf16.msra.mxu0 %v1697
          %1769 = vmatmul.bf16.gmra.mxu0 %v1561
          %v1770 = vpop.f32.mrf.mxu0
          %v1771 = vadd.f32 %v1597, %v1770
          %v1772 = vpop.f32.mrf.mxu0
          %1773 = vdwg.mxu0
          %1774 = vmatpush.bf16.msra.mxu0 %v1727
          %1775 = vmatpush.bf16.msra.mxu0 %v1725
          %1776 = vmatpush.bf16.msra.mxu0 %v1723
          %1777 = vmatpush.bf16.msra.mxu0 %v1721
          %1778 = vmatpush.bf16.msra.mxu0 %v1719
          %1779 = vmatpush.bf16.msra.mxu0 %v1717
          %1780 = vmatpush.bf16.msra.mxu0 %v1715
          %1781 = vmatpush.bf16.msra.mxu0 %v1713
          %1782 = vmatmul.bf16.gmra.mxu0 %v1562
          %v1783 = vpop.f32.mrf.mxu0
          %v1784 = vadd.f32 %v1771, %v1783
          %v1785 = vpop.f32.mrf.mxu0
          %1786 = vdwg.mxu0
          %1787 = vmatpush.bf16.msra.mxu0 %v1712
          %1788 = vmatpush.bf16.msra.mxu0 %v1710
          %1789 = vmatpush.bf16.msra.mxu0 %v1708
          %1790 = vmatpush.bf16.msra.mxu0 %v1706
          %1791 = vmatpush.bf16.msra.mxu0 %v1704
          %1792 = vmatpush.bf16.msra.mxu0 %v1702
          %1793 = vmatpush.bf16.msra.mxu0 %v1700
          %1794 = vmatpush.bf16.msra.mxu0 %v1698
          %1795 = vmatmul.bf16.gmra.mxu0 %v1561
          %v1796 = vpop.f32.mrf.mxu0
          %v1797 = vadd.f32 %v1598, %v1796
          %v1798 = vpop.f32.mrf.mxu0
          %1799 = vdwg.mxu0
          %1800 = vmatpush.bf16.msra.mxu0 %v1728
          %1801 = vmatpush.bf16.msra.mxu0 %v1726
          %1802 = vmatpush.bf16.msra.mxu0 %v1724
          %1803 = vmatpush.bf16.msra.mxu0 %v1722
          %1804 = vmatpush.bf16.msra.mxu0 %v1720
          %1805 = vmatpush.bf16.msra.mxu0 %v1718
          %1806 = vmatpush.bf16.msra.mxu0 %v1716
          %1807 = vmatpush.bf16.msra.mxu0 %v1714
          %1808 = vmatmul.bf16.gmra.mxu0 %v1562
          %v1809 = vpop.f32.mrf.mxu0
          %v1810 = vadd.f32 %v1797, %v1809
          %v1811 = vpop.f32.mrf.mxu0
          %1812 = vdwg.mxu0
          %v1813 = vmax.f32 %v1784, %v1810
          %1814 = vmax.xlane.f32.xlu0 %v1813
          %v1815 = vpop.xlane.xlu0 %1814
          %v1816 = vsub.f32 %v1784, %v1815
          %v1817 = vsub.f32 %v1810, %v1815
          %v1818 = vmul.f32 %v1816, 1.442695
          %v1819 = vpow.pop %v1818
          %v1820 = vmul.f32 %v1817, 1.442695
          %v1821 = vpow.pop %v1820
          %v1822 = vadd.f32 %v1819, %v1821
          %1823 = vadd.xlane.f32.xlu0 %v1822
          %v1824 = vpop.xlane.xlu0 %1823
          %v1825 = vrcp.pop %v1824
          %v1826 = vmul.f32 %v1819, %v1825
          %v1827 = vmul.f32 %v1821, %v1825
          %v1828 = vmul.f32 %v1559, %v1826
          %v1829 = vmul.f32 %v1560, %v1827
          %v1830 = vpack.c.bf16 %v1828, %v1828
          %v1831 = vpack.c.bf16 %v1829, %v1829
          %v1832 = vld [vmem:[#allocation15] sm:$0xff]
          %v1833 = vld [vmem:[#allocation15 + $0x8] sm:$0xff]
          %v1834 = vld [vmem:[#allocation15 + $0x10] sm:$0xff]
          %v1835 = vld [vmem:[#allocation15 + $0x18] sm:$0xff]
          %v1836 = vld [vmem:[#allocation15 + $0x20] sm:$0xff]
          %v1837 = vld [vmem:[#allocation15 + $0x28] sm:$0xff]
          %v1838 = vld [vmem:[#allocation15 + $0x30] sm:$0xff]
          %v1839 = vld [vmem:[#allocation15 + $0x38] sm:$0xff]
          %v1840 = vld [vmem:[#allocation15 + $0x40] sm:$0xff]
          %v1841 = vld [vmem:[#allocation15 + $0x48] sm:$0xff]
          %v1842 = vld [vmem:[#allocation15 + $0x50] sm:$0xff]
          %v1843 = vld [vmem:[#allocation15 + $0x58] sm:$0xff]
          %v1844 = vld [vmem:[#allocation15 + $0x60] sm:$0xff]
          %v1845 = vld [vmem:[#allocation15 + $0x68] sm:$0xff]
          %v1846 = vld [vmem:[#allocation15 + $0x70] sm:$0xff]
          %v1847 = vld [vmem:[#allocation15 + $0x78] sm:$0xff]
          %v1848 = vld [vmem:[#allocation15 + $0x80] sm:$0xff]
          %v1849 = vld [vmem:[#allocation15 + $0x88] sm:$0xff]
          %v1850 = vld [vmem:[#allocation15 + $0x90] sm:$0xff]
          %v1851 = vld [vmem:[#allocation15 + $0x98] sm:$0xff]
          %v1852 = vld [vmem:[#allocation15 + $0xa0] sm:$0xff]
          %v1853 = vld [vmem:[#allocation15 + $0xa8] sm:$0xff]
          %v1854 = vld [vmem:[#allocation15 + $0xb0] sm:$0xff]
          %v1855 = vld [vmem:[#allocation15 + $0xb8] sm:$0xff]
          %v1856 = vld [vmem:[#allocation15 + $0xc0] sm:$0xff]
          %v1857 = vld [vmem:[#allocation15 + $0xc8] sm:$0xff]
          %v1858 = vld [vmem:[#allocation15 + $0xd0] sm:$0xff]
          %v1859 = vld [vmem:[#allocation15 + $0xd8] sm:$0xff]
          %v1860 = vld [vmem:[#allocation15 + $0xe0] sm:$0xff]
          %v1861 = vld [vmem:[#allocation15 + $0xe8] sm:$0xff]
          %v1862 = vld [vmem:[#allocation15 + $0xf0] sm:$0xff]
          %v1863 = vld [vmem:[#allocation15 + $0xf8] sm:$0xff]
          %v1864 = vld [vmem:[#allocation15 + $0x100] sm:$0xff]
          %v1865 = vld [vmem:[#allocation15 + $0x108] sm:$0xff]
          %v1866 = vld [vmem:[#allocation15 + $0x110] sm:$0xff]
          %v1867 = vld [vmem:[#allocation15 + $0x118] sm:$0xff]
          %v1868 = vld [vmem:[#allocation15 + $0x120] sm:$0xff]
          %v1869 = vld [vmem:[#allocation15 + $0x128] sm:$0xff]
          %v1870 = vld [vmem:[#allocation15 + $0x130] sm:$0xff]
          %v1871 = vld [vmem:[#allocation15 + $0x138] sm:$0xff]
          %v1872 = vld [vmem:[#allocation15 + $0x140] sm:$0xff]
          %v1873 = vld [vmem:[#allocation15 + $0x148] sm:$0xff]
          %v1874 = vld [vmem:[#allocation15 + $0x150] sm:$0xff]
          %v1875 = vld [vmem:[#allocation15 + $0x158] sm:$0xff]
          %v1876 = vld [vmem:[#allocation15 + $0x160] sm:$0xff]
          %v1877 = vld [vmem:[#allocation15 + $0x168] sm:$0xff]
          %v1878 = vld [vmem:[#allocation15 + $0x170] sm:$0xff]
          %v1879 = vld [vmem:[#allocation15 + $0x178] sm:$0xff]
          %v1880 = vld [vmem:[#allocation15 + $0x180] sm:$0xff]
          %v1881 = vld [vmem:[#allocation15 + $0x188] sm:$0xff]
          %v1882 = vld [vmem:[#allocation15 + $0x190] sm:$0xff]
          %v1883 = vld [vmem:[#allocation15 + $0x198] sm:$0xff]
          %v1884 = vld [vmem:[#allocation15 + $0x1a0] sm:$0xff]
          %v1885 = vld [vmem:[#allocation15 + $0x1a8] sm:$0xff]
          %v1886 = vld [vmem:[#allocation15 + $0x1b0] sm:$0xff]
          %v1887 = vld [vmem:[#allocation15 + $0x1b8] sm:$0xff]
          %v1888 = vld [vmem:[#allocation15 + $0x1c0] sm:$0xff]
          %v1889 = vld [vmem:[#allocation15 + $0x1c8] sm:$0xff]
          %v1890 = vld [vmem:[#allocation15 + $0x1d0] sm:$0xff]
          %v1891 = vld [vmem:[#allocation15 + $0x1d8] sm:$0xff]
          %v1892 = vld [vmem:[#allocation15 + $0x1e0] sm:$0xff]
          %v1893 = vld [vmem:[#allocation15 + $0x1e8] sm:$0xff]
          %v1894 = vld [vmem:[#allocation15 + $0x1f0] sm:$0xff]
          %v1895 = vld [vmem:[#allocation15 + $0x1f8] sm:$0xff]
          %v1896 = vld [vmem:[%s8] sm:$0xf]
          %v1898 = vperm.slane %v1896, 0
          %v1899 = vperm.slane %v1896, 1
          %v1900 = vperm.slane %v1896, 2
          %v1901 = vperm.slane %v1896, 3
          %v1970 = vunpack.c.l.b16 %v1832
          %v1971 = vunpack.c.h.b16 %v1832
          %v1972 = vunpack.c.l.b16 %v1833
          %v1973 = vunpack.c.h.b16 %v1833
          %v1974 = vunpack.c.l.b16 %v1834
          %v1975 = vunpack.c.h.b16 %v1834
          %v1976 = vunpack.c.l.b16 %v1835
          %v1977 = vunpack.c.h.b16 %v1835
          %v1978 = vunpack.c.l.b16 %v1836
          %v1979 = vunpack.c.h.b16 %v1836
          %v1980 = vunpack.c.l.b16 %v1837
          %v1981 = vunpack.c.h.b16 %v1837
          %v1982 = vunpack.c.l.b16 %v1838
          %v1983 = vunpack.c.h.b16 %v1838
          %v1984 = vunpack.c.l.b16 %v1839
          %v1985 = vunpack.c.h.b16 %v1839
          %v1986 = vunpack.c.l.b16 %v1840
          %v1987 = vunpack.c.h.b16 %v1840
          %v1988 = vunpack.c.l.b16 %v1841
          %v1989 = vunpack.c.h.b16 %v1841
          %v1990 = vunpack.c.l.b16 %v1842
          %v1991 = vunpack.c.h.b16 %v1842
          %v1992 = vunpack.c.l.b16 %v1843
          %v1993 = vunpack.c.h.b16 %v1843
          %v1994 = vunpack.c.l.b16 %v1844
          %v1995 = vunpack.c.h.b16 %v1844
          %v1996 = vunpack.c.l.b16 %v1845
          %v1997 = vunpack.c.h.b16 %v1845
          %v1998 = vunpack.c.l.b16 %v1846
          %v1999 = vunpack.c.h.b16 %v1846
          %v2000 = vunpack.c.l.b16 %v1847
          %v2001 = vunpack.c.h.b16 %v1847
          %v2002 = vunpack.c.l.b16 %v1848
          %v2003 = vunpack.c.h.b16 %v1848
          %v2004 = vunpack.c.l.b16 %v1849
          %v2005 = vunpack.c.h.b16 %v1849
          %v2006 = vunpack.c.l.b16 %v1850
          %v2007 = vunpack.c.h.b16 %v1850
          %v2008 = vunpack.c.l.b16 %v1851
          %v2009 = vunpack.c.h.b16 %v1851
          %v2010 = vunpack.c.l.b16 %v1852
          %v2011 = vunpack.c.h.b16 %v1852
          %v2012 = vunpack.c.l.b16 %v1853
          %v2013 = vunpack.c.h.b16 %v1853
          %v2014 = vunpack.c.l.b16 %v1854
          %v2015 = vunpack.c.h.b16 %v1854
          %v2016 = vunpack.c.l.b16 %v1855
          %v2017 = vunpack.c.h.b16 %v1855
          %v2018 = vunpack.c.l.b16 %v1856
          %v2019 = vunpack.c.h.b16 %v1856
          %v2020 = vunpack.c.l.b16 %v1857
          %v2021 = vunpack.c.h.b16 %v1857
          %v2022 = vunpack.c.l.b16 %v1858
          %v2023 = vunpack.c.h.b16 %v1858
          %v2024 = vunpack.c.l.b16 %v1859
          %v2025 = vunpack.c.h.b16 %v1859
          %v2026 = vunpack.c.l.b16 %v1860
          %v2027 = vunpack.c.h.b16 %v1860
          %v2028 = vunpack.c.l.b16 %v1861
          %v2029 = vunpack.c.h.b16 %v1861
          %v2030 = vunpack.c.l.b16 %v1862
          %v2031 = vunpack.c.h.b16 %v1862
          %v2032 = vunpack.c.l.b16 %v1863
          %v2033 = vunpack.c.h.b16 %v1863
          %v2034 = vunpack.c.l.b16 %v1864
          %v2035 = vunpack.c.h.b16 %v1864
          %v2036 = vunpack.c.l.b16 %v1865
          %v2037 = vunpack.c.h.b16 %v1865
          %v2038 = vunpack.c.l.b16 %v1866
          %v2039 = vunpack.c.h.b16 %v1866
          %v2040 = vunpack.c.l.b16 %v1867
          %v2041 = vunpack.c.h.b16 %v1867
          %v2042 = vunpack.c.l.b16 %v1868
          %v2043 = vunpack.c.h.b16 %v1868
          %v2044 = vunpack.c.l.b16 %v1869
          %v2045 = vunpack.c.h.b16 %v1869
          %v2046 = vunpack.c.l.b16 %v1870
          %v2047 = vunpack.c.h.b16 %v1870
          %v2048 = vunpack.c.l.b16 %v1871
          %v2049 = vunpack.c.h.b16 %v1871
          %v2050 = vunpack.c.l.b16 %v1872
          %v2051 = vunpack.c.h.b16 %v1872
          %v2052 = vunpack.c.l.b16 %v1873
          %v2053 = vunpack.c.h.b16 %v1873
          %v2054 = vunpack.c.l.b16 %v1874
          %v2055 = vunpack.c.h.b16 %v1874
          %v2056 = vunpack.c.l.b16 %v1875
          %v2057 = vunpack.c.h.b16 %v1875
          %v2058 = vunpack.c.l.b16 %v1876
          %v2059 = vunpack.c.h.b16 %v1876
          %v2060 = vunpack.c.l.b16 %v1877
          %v2061 = vunpack.c.h.b16 %v1877
          %v2062 = vunpack.c.l.b16 %v1878
          %v2063 = vunpack.c.h.b16 %v1878
          %v2064 = vunpack.c.l.b16 %v1879
          %v2065 = vunpack.c.h.b16 %v1879
          %v2066 = vunpack.c.l.b16 %v1880
          %v2067 = vunpack.c.h.b16 %v1880
          %v2068 = vunpack.c.l.b16 %v1881
          %v2069 = vunpack.c.h.b16 %v1881
          %v2070 = vunpack.c.l.b16 %v1882
          %v2071 = vunpack.c.h.b16 %v1882
          %v2072 = vunpack.c.l.b16 %v1883
          %v2073 = vunpack.c.h.b16 %v1883
          %v2074 = vunpack.c.l.b16 %v1884
          %v2075 = vunpack.c.h.b16 %v1884
          %v2076 = vunpack.c.l.b16 %v1885
          %v2077 = vunpack.c.h.b16 %v1885
          %v2078 = vunpack.c.l.b16 %v1886
          %v2079 = vunpack.c.h.b16 %v1886
          %v2080 = vunpack.c.l.b16 %v1887
          %v2081 = vunpack.c.h.b16 %v1887
          %v2082 = vunpack.c.l.b16 %v1888
          %v2083 = vunpack.c.h.b16 %v1888
          %v2084 = vunpack.c.l.b16 %v1889
          %v2085 = vunpack.c.h.b16 %v1889
          %v2086 = vunpack.c.l.b16 %v1890
          %v2087 = vunpack.c.h.b16 %v1890
          %v2088 = vunpack.c.l.b16 %v1891
          %v2089 = vunpack.c.h.b16 %v1891
          %v2090 = vunpack.c.l.b16 %v1892
          %v2091 = vunpack.c.h.b16 %v1892
          %v2092 = vunpack.c.l.b16 %v1893
          %v2093 = vunpack.c.h.b16 %v1893
          %v2094 = vunpack.c.l.b16 %v1894
          %v2095 = vunpack.c.h.b16 %v1894
          %v2096 = vunpack.c.l.b16 %v1895
          %v2097 = vunpack.c.h.b16 %v1895
          %v2098 = vpack.c.b16 %v1974, %v1970
          %v2099 = vpack.c.b16 %v1975, %v1971
          %v2100 = vpack.c.b16 %v1976, %v1972
          %v2101 = vpack.c.b16 %v1977, %v1973
          %v2102 = vpack.c.b16 %v1982, %v1978
          %v2103 = vpack.c.b16 %v1983, %v1979
          %v2104 = vpack.c.b16 %v1984, %v1980
          %v2105 = vpack.c.b16 %v1985, %v1981
          %v2106 = vpack.c.b16 %v1990, %v1986
          %v2107 = vpack.c.b16 %v1991, %v1987
          %v2108 = vpack.c.b16 %v1992, %v1988
          %v2109 = vpack.c.b16 %v1993, %v1989
          %v2110 = vpack.c.b16 %v1998, %v1994
          %v2111 = vpack.c.b16 %v1999, %v1995
          %v2112 = vpack.c.b16 %v2000, %v1996
          %v2113 = vpack.c.b16 %v2001, %v1997
          %v2114 = vpack.c.b16 %v2006, %v2002
          %v2115 = vpack.c.b16 %v2007, %v2003
          %v2116 = vpack.c.b16 %v2008, %v2004
          %v2117 = vpack.c.b16 %v2009, %v2005
          %v2118 = vpack.c.b16 %v2014, %v2010
          %v2119 = vpack.c.b16 %v2015, %v2011
          %v2120 = vpack.c.b16 %v2016, %v2012
          %v2121 = vpack.c.b16 %v2017, %v2013
          %v2122 = vpack.c.b16 %v2022, %v2018
          %v2123 = vpack.c.b16 %v2023, %v2019
          %v2124 = vpack.c.b16 %v2024, %v2020
          %v2125 = vpack.c.b16 %v2025, %v2021
          %v2126 = vpack.c.b16 %v2030, %v2026
          %v2127 = vpack.c.b16 %v2031, %v2027
          %v2128 = vpack.c.b16 %v2032, %v2028
          %v2129 = vpack.c.b16 %v2033, %v2029
          %v2130 = vpack.c.b16 %v2038, %v2034
          %v2131 = vpack.c.b16 %v2039, %v2035
          %v2132 = vpack.c.b16 %v2040, %v2036
          %v2133 = vpack.c.b16 %v2041, %v2037
          %v2134 = vpack.c.b16 %v2046, %v2042
          %v2135 = vpack.c.b16 %v2047, %v2043
          %v2136 = vpack.c.b16 %v2048, %v2044
          %v2137 = vpack.c.b16 %v2049, %v2045
          %v2138 = vpack.c.b16 %v2054, %v2050
          %v2139 = vpack.c.b16 %v2055, %v2051
          %v2140 = vpack.c.b16 %v2056, %v2052
          %v2141 = vpack.c.b16 %v2057, %v2053
          %v2142 = vpack.c.b16 %v2062, %v2058
          %v2143 = vpack.c.b16 %v2063, %v2059
          %v2144 = vpack.c.b16 %v2064, %v2060
          %v2145 = vpack.c.b16 %v2065, %v2061
          %v2146 = vpack.c.b16 %v2070, %v2066
          %v2147 = vpack.c.b16 %v2071, %v2067
          %v2148 = vpack.c.b16 %v2072, %v2068
          %v2149 = vpack.c.b16 %v2073, %v2069
          %v2150 = vpack.c.b16 %v2078, %v2074
          %v2151 = vpack.c.b16 %v2079, %v2075
          %v2152 = vpack.c.b16 %v2080, %v2076
          %v2153 = vpack.c.b16 %v2081, %v2077
          %v2154 = vpack.c.b16 %v2086, %v2082
          %v2155 = vpack.c.b16 %v2087, %v2083
          %v2156 = vpack.c.b16 %v2088, %v2084
          %v2157 = vpack.c.b16 %v2089, %v2085
          %v2158 = vpack.c.b16 %v2094, %v2090
          %v2159 = vpack.c.b16 %v2095, %v2091
          %v2160 = vpack.c.b16 %v2096, %v2092
          %v2161 = vpack.c.b16 %v2097, %v2093
          %2226 = vmatpush.bf16.msra.mxu0 %v2126
          %2227 = vmatpush.bf16.msra.mxu0 %v2122
          %2228 = vmatpush.bf16.msra.mxu0 %v2118
          %2229 = vmatpush.bf16.msra.mxu0 %v2114
          %2230 = vmatpush.bf16.msra.mxu0 %v2110
          %2231 = vmatpush.bf16.msra.mxu0 %v2106
          %2232 = vmatpush.bf16.msra.mxu0 %v2102
          %2233 = vmatpush.bf16.msra.mxu0 %v2098
          %2234 = vmatmul.bf16.gmra.mxu0 %v1830
          %v2235 = vpop.f32.mrf.mxu0
          %v2236 = vadd.f32 %v1898, %v2235
          %v2237 = vpop.f32.mrf.mxu0
          %2238 = vdwg.mxu0
          %2239 = vmatpush.bf16.msra.mxu0 %v2158
          %2240 = vmatpush.bf16.msra.mxu0 %v2154
          %2241 = vmatpush.bf16.msra.mxu0 %v2150
          %2242 = vmatpush.bf16.msra.mxu0 %v2146
          %2243 = vmatpush.bf16.msra.mxu0 %v2142
          %2244 = vmatpush.bf16.msra.mxu0 %v2138
          %2245 = vmatpush.bf16.msra.mxu0 %v2134
          %2246 = vmatpush.bf16.msra.mxu0 %v2130
          %2247 = vmatmul.bf16.gmra.mxu0 %v1831
          %v2248 = vpop.f32.mrf.mxu0
          %v2249 = vadd.f32 %v2236, %v2248
          %v2250 = vpop.f32.mrf.mxu0
          %2251 = vdwg.mxu0
          %2252 = vmatpush.bf16.msra.mxu0 %v2127
          %2253 = vmatpush.bf16.msra.mxu0 %v2123
          %2254 = vmatpush.bf16.msra.mxu0 %v2119
          %2255 = vmatpush.bf16.msra.mxu0 %v2115
          %2256 = vmatpush.bf16.msra.mxu0 %v2111
          %2257 = vmatpush.bf16.msra.mxu0 %v2107
          %2258 = vmatpush.bf16.msra.mxu0 %v2103
          %2259 = vmatpush.bf16.msra.mxu0 %v2099
          %2260 = vmatmul.bf16.gmra.mxu0 %v1830
          %v2261 = vpop.f32.mrf.mxu0
          %v2262 = vadd.f32 %v1899, %v2261
          %v2263 = vpop.f32.mrf.mxu0
          %2264 = vdwg.mxu0
          %2265 = vmatpush.bf16.msra.mxu0 %v2159
          %2266 = vmatpush.bf16.msra.mxu0 %v2155
          %2267 = vmatpush.bf16.msra.mxu0 %v2151
          %2268 = vmatpush.bf16.msra.mxu0 %v2147
          %2269 = vmatpush.bf16.msra.mxu0 %v2143
          %2270 = vmatpush.bf16.msra.mxu0 %v2139
          %2271 = vmatpush.bf16.msra.mxu0 %v2135
          %2272 = vmatpush.bf16.msra.mxu0 %v2131
          %2273 = vmatmul.bf16.gmra.mxu0 %v1831
          %v2274 = vpop.f32.mrf.mxu0
          %v2275 = vadd.f32 %v2262, %v2274
          %v2276 = vpop.f32.mrf.mxu0
          %2277 = vdwg.mxu0
          %2278 = vmatpush.bf16.msra.mxu0 %v2128
          %2279 = vmatpush.bf16.msra.mxu0 %v2124
          %2280 = vmatpush.bf16.msra.mxu0 %v2120
          %2281 = vmatpush.bf16.msra.mxu0 %v2116
          %2282 = vmatpush.bf16.msra.mxu0 %v2112
          %2283 = vmatpush.bf16.msra.mxu0 %v2108
          %2284 = vmatpush.bf16.msra.mxu0 %v2104
          %2285 = vmatpush.bf16.msra.mxu0 %v2100
          %2286 = vmatmul.bf16.gmra.mxu0 %v1830
          %v2287 = vpop.f32.mrf.mxu0
          %v2288 = vadd.f32 %v1900, %v2287
          %v2289 = vpop.f32.mrf.mxu0
          %2290 = vdwg.mxu0
          %2291 = vmatpush.bf16.msra.mxu0 %v2160
          %2292 = vmatpush.bf16.msra.mxu0 %v2156
          %2293 = vmatpush.bf16.msra.mxu0 %v2152
          %2294 = vmatpush.bf16.msra.mxu0 %v2148
          %2295 = vmatpush.bf16.msra.mxu0 %v2144
          %2296 = vmatpush.bf16.msra.mxu0 %v2140
          %2297 = vmatpush.bf16.msra.mxu0 %v2136
          %2298 = vmatpush.bf16.msra.mxu0 %v2132
          %2299 = vmatmul.bf16.gmra.mxu0 %v1831
          %v2300 = vpop.f32.mrf.mxu0
          %v2301 = vadd.f32 %v2288, %v2300
          %v2302 = vpop.f32.mrf.mxu0
          %2303 = vdwg.mxu0
          %2304 = vmatpush.bf16.msra.mxu0 %v2129
          %2305 = vmatpush.bf16.msra.mxu0 %v2125
          %2306 = vmatpush.bf16.msra.mxu0 %v2121
          %2307 = vmatpush.bf16.msra.mxu0 %v2117
          %2308 = vmatpush.bf16.msra.mxu0 %v2113
          %2309 = vmatpush.bf16.msra.mxu0 %v2109
          %2310 = vmatpush.bf16.msra.mxu0 %v2105
          %2311 = vmatpush.bf16.msra.mxu0 %v2101
          %2312 = vmatmul.bf16.gmra.mxu0 %v1830
          %v2313 = vpop.f32.mrf.mxu0
          %v2314 = vadd.f32 %v1901, %v2313
          %v2315 = vpop.f32.mrf.mxu0
          %2316 = vdwg.mxu0
          %2317 = vmatpush.bf16.msra.mxu0 %v2161
          %2318 = vmatpush.bf16.msra.mxu0 %v2157
          %2319 = vmatpush.bf16.msra.mxu0 %v2153
          %2320 = vmatpush.bf16.msra.mxu0 %v2149
          %2321 = vmatpush.bf16.msra.mxu0 %v2145
          %2322 = vmatpush.bf16.msra.mxu0 %v2141
          %2323 = vmatpush.bf16.msra.mxu0 %v2137
          %2324 = vmatpush.bf16.msra.mxu0 %v2133
          %2325 = vmatmul.bf16.gmra.mxu0 %v1831
          %v2326 = vpop.f32.mrf.mxu0
          %v2327 = vadd.f32 %v2314, %v2326
          %v2328 = vpop.f32.mrf.mxu0
          %2329 = vdwg.mxu0
          %vm2330 = vcmp.ge.f32.partialorder %v2249, 0.0
          %vm2331 = vcmp.ge.f32.partialorder %v2275, 0.0
          %vm2332 = vcmp.ge.f32.partialorder %v2301, 0.0
          %vm2333 = vcmp.ge.f32.partialorder %v2327, 0.0
          %v2334 = vmul.f32 %v2249, 0.01
          %v2335 = vmul.f32 %v2275, 0.01
          %v2336 = vmul.f32 %v2301, 0.01
          %v2337 = vmul.f32 %v2327, 0.01
          %v2338 = vsel %vm2330, %v2249, %v2334
          %v2339 = vsel %vm2331, %v2275, %v2335
          %v2340 = vsel %vm2332, %v2301, %v2336
          %v2341 = vsel %vm2333, %v2327, %v2337
          %v2342 = vadd.f32 %v2338, %v1053
          %v2343 = vadd.f32 %v2339, %v1054
          %v2344 = vadd.f32 %v2340, %v1055
          %v2345 = vadd.f32 %v2341, %v1056
          %v2346 = vpack.c.bf16 %v2343, %v2342
          %v2347 = vpack.c.bf16 %v2345, %v2344
          %2348 = vst [vmem:[#allocation3] sm:$0xff] %v2346
          %2349 = vst [vmem:[#allocation3 + $0x8] sm:$0xff] %v2347
          %v2350 = vld [vmem:[#allocation18] sm:$0xf]
          %v2351 = vld [vmem:[#allocation18 + $0x4] sm:$0xf]
          %v2352 = vld [vmem:[#allocation18 + $0x8] sm:$0xf]
          %v2353 = vld [vmem:[#allocation18 + $0xc] sm:$0xf]
          %v2354 = vld [vmem:[#allocation18 + $0x10] sm:$0xf]
          %v2355 = vld [vmem:[#allocation18 + $0x14] sm:$0xf]
          %v2356 = vld [vmem:[#allocation18 + $0x18] sm:$0xf]
          %v2357 = vld [vmem:[#allocation18 + $0x1c] sm:$0xf]
          %v2358 = vld [vmem:[#allocation18 + $0x20] sm:$0xf]
          %v2359 = vld [vmem:[#allocation18 + $0x24] sm:$0xf]
          %v2360 = vld [vmem:[#allocation18 + $0x28] sm:$0xf]
          %v2361 = vld [vmem:[#allocation18 + $0x2c] sm:$0xf]
          %v2362 = vld [vmem:[#allocation18 + $0x30] sm:$0xf]
          %v2363 = vld [vmem:[#allocation18 + $0x34] sm:$0xf]
          %v2364 = vld [vmem:[#allocation18 + $0x38] sm:$0xf]
          %v2365 = vld [vmem:[#allocation18 + $0x3c] sm:$0xf]
          %v2366 = vld [vmem:[#allocation18 + $0x40] sm:$0xf]
          %v2367 = vld [vmem:[#allocation18 + $0x44] sm:$0xf]
          %v2368 = vld [vmem:[#allocation18 + $0x48] sm:$0xf]
          %v2369 = vld [vmem:[#allocation18 + $0x4c] sm:$0xf]
          %v2370 = vld [vmem:[#allocation18 + $0x50] sm:$0xf]
          %v2371 = vld [vmem:[#allocation18 + $0x54] sm:$0xf]
          %v2372 = vld [vmem:[#allocation18 + $0x58] sm:$0xf]
          %v2373 = vld [vmem:[#allocation18 + $0x5c] sm:$0xf]
          %v2374 = vld [vmem:[#allocation18 + $0x60] sm:$0xf]
          %v2375 = vld [vmem:[#allocation18 + $0x64] sm:$0xf]
          %v2376 = vld [vmem:[#allocation18 + $0x68] sm:$0xf]
          %v2377 = vld [vmem:[#allocation18 + $0x6c] sm:$0xf]
          %v2378 = vld [vmem:[#allocation18 + $0x70] sm:$0xf]
          %v2379 = vld [vmem:[#allocation18 + $0x74] sm:$0xf]
          %v2380 = vld [vmem:[#allocation18 + $0x78] sm:$0xf]
          %v2381 = vld [vmem:[#allocation18 + $0x7c] sm:$0xf]
          %v2382 = vld [vmem:[%s12] sm:$0x1]
          %v2384 = vperm.slane %v2382, 0
          %v2418 = vunpack.c.l.b16 %v2350
          %v2419 = vunpack.c.l.b16 %v2351
          %v2420 = vunpack.c.l.b16 %v2352
          %v2421 = vunpack.c.l.b16 %v2353
          %v2422 = vunpack.c.l.b16 %v2354
          %v2423 = vunpack.c.l.b16 %v2355
          %v2424 = vunpack.c.l.b16 %v2356
          %v2425 = vunpack.c.l.b16 %v2357
          %v2426 = vunpack.c.l.b16 %v2358
          %v2427 = vunpack.c.l.b16 %v2359
          %v2428 = vunpack.c.l.b16 %v2360
          %v2429 = vunpack.c.l.b16 %v2361
          %v2430 = vunpack.c.l.b16 %v2362
          %v2431 = vunpack.c.l.b16 %v2363
          %v2432 = vunpack.c.l.b16 %v2364
          %v2433 = vunpack.c.l.b16 %v2365
          %v2434 = vunpack.c.l.b16 %v2366
          %v2435 = vunpack.c.l.b16 %v2367
          %v2436 = vunpack.c.l.b16 %v2368
          %v2437 = vunpack.c.l.b16 %v2369
          %v2438 = vunpack.c.l.b16 %v2370
          %v2439 = vunpack.c.l.b16 %v2371
          %v2440 = vunpack.c.l.b16 %v2372
          %v2441 = vunpack.c.l.b16 %v2373
          %v2442 = vunpack.c.l.b16 %v2374
          %v2443 = vunpack.c.l.b16 %v2375
          %v2444 = vunpack.c.l.b16 %v2376
          %v2445 = vunpack.c.l.b16 %v2377
          %v2446 = vunpack.c.l.b16 %v2378
          %v2447 = vunpack.c.l.b16 %v2379
          %v2448 = vunpack.c.l.b16 %v2380
          %v2449 = vunpack.c.l.b16 %v2381
          %v2450 = vpack.c.b16 %v2419, %v2418
          %v2451 = vpack.c.b16 %v2421, %v2420
          %v2452 = vpack.c.b16 %v2423, %v2422
          %v2453 = vpack.c.b16 %v2425, %v2424
          %v2454 = vpack.c.b16 %v2427, %v2426
          %v2455 = vpack.c.b16 %v2429, %v2428
          %v2456 = vpack.c.b16 %v2431, %v2430
          %v2457 = vpack.c.b16 %v2433, %v2432
          %v2458 = vpack.c.b16 %v2435, %v2434
          %v2459 = vpack.c.b16 %v2437, %v2436
          %v2460 = vpack.c.b16 %v2439, %v2438
          %v2461 = vpack.c.b16 %v2441, %v2440
          %v2462 = vpack.c.b16 %v2443, %v2442
          %v2463 = vpack.c.b16 %v2445, %v2444
          %v2464 = vpack.c.b16 %v2447, %v2446
          %v2465 = vpack.c.b16 %v2449, %v2448
          %2482 = vmatpush.bf16.msra.mxu0 %v2457
          %2483 = vmatpush.bf16.msra.mxu0 %v2456
          %2484 = vmatpush.bf16.msra.mxu0 %v2455
          %2485 = vmatpush.bf16.msra.mxu0 %v2454
          %2486 = vmatpush.bf16.msra.mxu0 %v2453
          %2487 = vmatpush.bf16.msra.mxu0 %v2452
          %2488 = vmatpush.bf16.msra.mxu0 %v2451
          %2489 = vmatpush.bf16.msra.mxu0 %v2450
          %2490 = vmatmul.bf16.gmra.mxu0 %v1830
          %v2491 = vpop.f32.mrf.mxu0
          %v2492 = vadd.f32 %v2384, %v2491
          %v2493 = vpop.f32.mrf.mxu0
          %2494 = vdwg.mxu0
          %2495 = vmatpush.bf16.msra.mxu0 %v2465
          %2496 = vmatpush.bf16.msra.mxu0 %v2464
          %2497 = vmatpush.bf16.msra.mxu0 %v2463
          %2498 = vmatpush.bf16.msra.mxu0 %v2462
          %2499 = vmatpush.bf16.msra.mxu0 %v2461
          %2500 = vmatpush.bf16.msra.mxu0 %v2460
          %2501 = vmatpush.bf16.msra.mxu0 %v2459
          %2502 = vmatpush.bf16.msra.mxu0 %v2458
          %2503 = vmatmul.bf16.gmra.mxu0 %v1831
          %v2504 = vpop.f32.mrf.mxu0
          %v2505 = vadd.f32 %v2492, %v2504
          %v2506 = vpop.f32.mrf.mxu0
          %2507 = vdwg.mxu0
          %2508 = vst [vmem:[#allocation19] sm:$0xff] %v2505
          %2509 = vst [vmem:[#allocation22] sm:$0xff] %v1826
          %2510 = vst [vmem:[#allocation22 + $0x8] sm:$0xff] %v1827
        $region120: #{tpu_custom_call.1} parent=71 // pred_fallthru
          _
        %p2511 = scmp.eq.s32.totalorder %s46, 1
        // Predicated region
        $region121: #{tpu_custom_call.1} parent=71 // pred_check
          %p2512 = pneg %p2511
        $region122: #{tpu_custom_call.1} parent=71 // pred_check_branch
          %2514 = sbr.rel (%p2512) target = $region124
        $region123: #{tpu_custom_call.1} parent=71 // pred_region
          %v2515 = vld [vmem:[#allocation3] sm:$0xff]
          %v2516 = vld [vmem:[#allocation3 + $0x8] sm:$0xff]
          %v2517 = vld [vmem:[%s670] sm:$0xf]
          %v2518 = vld [vmem:[%s670 + $0x4] sm:$0xf]
          %v2519 = vld [vmem:[%s670 + $0x8] sm:$0xf]
          %v2520 = vld [vmem:[%s670 + $0xc] sm:$0xf]
          %v2521 = vld [vmem:[%s670 + $0x10] sm:$0xf]
          %v2522 = vld [vmem:[%s670 + $0x14] sm:$0xf]
          %v2523 = vld [vmem:[%s670 + $0x18] sm:$0xf]
          %v2524 = vld [vmem:[%s670 + $0x1c] sm:$0xf]
          %v2525 = vld [vmem:[%s670 + $0x20] sm:$0xf]
          %v2526 = vld [vmem:[%s670 + $0x24] sm:$0xf]
          %v2527 = vld [vmem:[%s670 + $0x28] sm:$0xf]
          %v2528 = vld [vmem:[%s670 + $0x2c] sm:$0xf]
          %v2529 = vld [vmem:[%s670 + $0x30] sm:$0xf]
          %v2530 = vld [vmem:[%s670 + $0x34] sm:$0xf]
          %v2531 = vld [vmem:[%s670 + $0x38] sm:$0xf]
          %v2532 = vld [vmem:[%s670 + $0x3c] sm:$0xf]
          %v2533 = vld [vmem:[%s670 + $0x40] sm:$0xf]
          %v2534 = vld [vmem:[%s670 + $0x44] sm:$0xf]
          %v2535 = vld [vmem:[%s670 + $0x48] sm:$0xf]
          %v2536 = vld [vmem:[%s670 + $0x4c] sm:$0xf]
          %v2537 = vld [vmem:[%s670 + $0x50] sm:$0xf]
          %v2538 = vld [vmem:[%s670 + $0x54] sm:$0xf]
          %v2539 = vld [vmem:[%s670 + $0x58] sm:$0xf]
          %v2540 = vld [vmem:[%s670 + $0x5c] sm:$0xf]
          %v2541 = vld [vmem:[%s670 + $0x60] sm:$0xf]
          %v2542 = vld [vmem:[%s670 + $0x64] sm:$0xf]
          %v2543 = vld [vmem:[%s670 + $0x68] sm:$0xf]
          %v2544 = vld [vmem:[%s670 + $0x6c] sm:$0xf]
          %v2545 = vld [vmem:[%s670 + $0x70] sm:$0xf]
          %v2546 = vld [vmem:[%s670 + $0x74] sm:$0xf]
          %v2547 = vld [vmem:[%s670 + $0x78] sm:$0xf]
          %v2548 = vld [vmem:[%s670 + $0x7c] sm:$0xf]
          %v2549 = vld [vmem:[%s670 + $0x80] sm:$0xf]
          %v2550 = vld [vmem:[%s670 + $0x84] sm:$0xf]
          %v2551 = vld [vmem:[%s670 + $0x88] sm:$0xf]
          %v2552 = vld [vmem:[%s670 + $0x8c] sm:$0xf]
          %v2553 = vld [vmem:[%s670 + $0x90] sm:$0xf]
          %v2554 = vld [vmem:[%s670 + $0x94] sm:$0xf]
          %v2555 = vld [vmem:[%s670 + $0x98] sm:$0xf]
          %v2556 = vld [vmem:[%s670 + $0x9c] sm:$0xf]
          %v2557 = vld [vmem:[%s670 + $0xa0] sm:$0xf]
          %v2558 = vld [vmem:[%s670 + $0xa4] sm:$0xf]
          %v2559 = vld [vmem:[%s670 + $0xa8] sm:$0xf]
          %v2560 = vld [vmem:[%s670 + $0xac] sm:$0xf]
          %v2561 = vld [vmem:[%s670 + $0xb0] sm:$0xf]
          %v2562 = vld [vmem:[%s670 + $0xb4] sm:$0xf]
          %v2563 = vld [vmem:[%s670 + $0xb8] sm:$0xf]
          %v2564 = vld [vmem:[%s670 + $0xbc] sm:$0xf]
          %v2565 = vld [vmem:[%s670 + $0xc0] sm:$0xf]
          %v2566 = vld [vmem:[%s670 + $0xc4] sm:$0xf]
          %v2567 = vld [vmem:[%s670 + $0xc8] sm:$0xf]
          %v2568 = vld [vmem:[%s670 + $0xcc] sm:$0xf]
          %v2569 = vld [vmem:[%s670 + $0xd0] sm:$0xf]
          %v2570 = vld [vmem:[%s670 + $0xd4] sm:$0xf]
          %v2571 = vld [vmem:[%s670 + $0xd8] sm:$0xf]
          %v2572 = vld [vmem:[%s670 + $0xdc] sm:$0xf]
          %v2573 = vld [vmem:[%s670 + $0xe0] sm:$0xf]
          %v2574 = vld [vmem:[%s670 + $0xe4] sm:$0xf]
          %v2575 = vld [vmem:[%s670 + $0xe8] sm:$0xf]
          %v2576 = vld [vmem:[%s670 + $0xec] sm:$0xf]
          %v2577 = vld [vmem:[%s670 + $0xf0] sm:$0xf]
          %v2578 = vld [vmem:[%s670 + $0xf4] sm:$0xf]
          %v2579 = vld [vmem:[%s670 + $0xf8] sm:$0xf]
          %v2580 = vld [vmem:[%s670 + $0xfc] sm:$0xf]
          %v2581 = vld [vmem:[%s748] sm:$0x1]
          %v2583 = vperm.slane %v2581, 0
          %v2587 = vunpack.c.l.b16 %v2515
          %v2588 = vunpack.c.h.b16 %v2515
          %v2589 = vunpack.c.l.b16 %v2516
          %v2590 = vunpack.c.h.b16 %v2516
          %v2591 = vpack.c.b16 %v2587, %v2587
          %v2592 = vpack.c.b16 %v2588, %v2588
          %v2593 = vpack.c.b16 %v2589, %v2589
          %v2594 = vpack.c.b16 %v2590, %v2590
          %v2663 = vunpack.c.l.b16 %v2517
          %v2664 = vunpack.c.l.b16 %v2518
          %v2665 = vunpack.c.l.b16 %v2519
          %v2666 = vunpack.c.l.b16 %v2520
          %v2667 = vunpack.c.l.b16 %v2521
          %v2668 = vunpack.c.l.b16 %v2522
          %v2669 = vunpack.c.l.b16 %v2523
          %v2670 = vunpack.c.l.b16 %v2524
          %v2671 = vunpack.c.l.b16 %v2525
          %v2672 = vunpack.c.l.b16 %v2526
          %v2673 = vunpack.c.l.b16 %v2527
          %v2674 = vunpack.c.l.b16 %v2528
          %v2675 = vunpack.c.l.b16 %v2529
          %v2676 = vunpack.c.l.b16 %v2530
          %v2677 = vunpack.c.l.b16 %v2531
          %v2678 = vunpack.c.l.b16 %v2532
          %v2679 = vunpack.c.l.b16 %v2533
          %v2680 = vunpack.c.l.b16 %v2534
          %v2681 = vunpack.c.l.b16 %v2535
          %v2682 = vunpack.c.l.b16 %v2536
          %v2683 = vunpack.c.l.b16 %v2537
          %v2684 = vunpack.c.l.b16 %v2538
          %v2685 = vunpack.c.l.b16 %v2539
          %v2686 = vunpack.c.l.b16 %v2540
          %v2687 = vunpack.c.l.b16 %v2541
          %v2688 = vunpack.c.l.b16 %v2542
          %v2689 = vunpack.c.l.b16 %v2543
          %v2690 = vunpack.c.l.b16 %v2544
          %v2691 = vunpack.c.l.b16 %v2545
          %v2692 = vunpack.c.l.b16 %v2546
          %v2693 = vunpack.c.l.b16 %v2547
          %v2694 = vunpack.c.l.b16 %v2548
          %v2695 = vunpack.c.l.b16 %v2549
          %v2696 = vunpack.c.l.b16 %v2550
          %v2697 = vunpack.c.l.b16 %v2551
          %v2698 = vunpack.c.l.b16 %v2552
          %v2699 = vunpack.c.l.b16 %v2553
          %v2700 = vunpack.c.l.b16 %v2554
          %v2701 = vunpack.c.l.b16 %v2555
          %v2702 = vunpack.c.l.b16 %v2556
          %v2703 = vunpack.c.l.b16 %v2557
          %v2704 = vunpack.c.l.b16 %v2558
          %v2705 = vunpack.c.l.b16 %v2559
          %v2706 = vunpack.c.l.b16 %v2560
          %v2707 = vunpack.c.l.b16 %v2561
          %v2708 = vunpack.c.l.b16 %v2562
          %v2709 = vunpack.c.l.b16 %v2563
          %v2710 = vunpack.c.l.b16 %v2564
          %v2711 = vunpack.c.l.b16 %v2565
          %v2712 = vunpack.c.l.b16 %v2566
          %v2713 = vunpack.c.l.b16 %v2567
          %v2714 = vunpack.c.l.b16 %v2568
          %v2715 = vunpack.c.l.b16 %v2569
          %v2716 = vunpack.c.l.b16 %v2570
          %v2717 = vunpack.c.l.b16 %v2571
          %v2718 = vunpack.c.l.b16 %v2572
          %v2719 = vunpack.c.l.b16 %v2573
          %v2720 = vunpack.c.l.b16 %v2574
          %v2721 = vunpack.c.l.b16 %v2575
          %v2722 = vunpack.c.l.b16 %v2576
          %v2723 = vunpack.c.l.b16 %v2577
          %v2724 = vunpack.c.l.b16 %v2578
          %v2725 = vunpack.c.l.b16 %v2579
          %v2726 = vunpack.c.l.b16 %v2580
          %v2727 = vpack.c.b16 %v2664, %v2663
          %v2728 = vpack.c.b16 %v2666, %v2665
          %v2729 = vpack.c.b16 %v2668, %v2667
          %v2730 = vpack.c.b16 %v2670, %v2669
          %v2731 = vpack.c.b16 %v2672, %v2671
          %v2732 = vpack.c.b16 %v2674, %v2673
          %v2733 = vpack.c.b16 %v2676, %v2675
          %v2734 = vpack.c.b16 %v2678, %v2677
          %v2735 = vpack.c.b16 %v2680, %v2679
          %v2736 = vpack.c.b16 %v2682, %v2681
          %v2737 = vpack.c.b16 %v2684, %v2683
          %v2738 = vpack.c.b16 %v2686, %v2685
          %v2739 = vpack.c.b16 %v2688, %v2687
          %v2740 = vpack.c.b16 %v2690, %v2689
          %v2741 = vpack.c.b16 %v2692, %v2691
          %v2742 = vpack.c.b16 %v2694, %v2693
          %v2743 = vpack.c.b16 %v2696, %v2695
          %v2744 = vpack.c.b16 %v2698, %v2697
          %v2745 = vpack.c.b16 %v2700, %v2699
          %v2746 = vpack.c.b16 %v2702, %v2701
          %v2747 = vpack.c.b16 %v2704, %v2703
          %v2748 = vpack.c.b16 %v2706, %v2705
          %v2749 = vpack.c.b16 %v2708, %v2707
          %v2750 = vpack.c.b16 %v2710, %v2709
          %v2751 = vpack.c.b16 %v2712, %v2711
          %v2752 = vpack.c.b16 %v2714, %v2713
          %v2753 = vpack.c.b16 %v2716, %v2715
          %v2754 = vpack.c.b16 %v2718, %v2717
          %v2755 = vpack.c.b16 %v2720, %v2719
          %v2756 = vpack.c.b16 %v2722, %v2721
          %v2757 = vpack.c.b16 %v2724, %v2723
          %v2758 = vpack.c.b16 %v2726, %v2725
          %2791 = vmatpush.bf16.msra.mxu0 %v2734
          %2792 = vmatpush.bf16.msra.mxu0 %v2733
          %2793 = vmatpush.bf16.msra.mxu0 %v2732
          %2794 = vmatpush.bf16.msra.mxu0 %v2731
          %2795 = vmatpush.bf16.msra.mxu0 %v2730
          %2796 = vmatpush.bf16.msra.mxu0 %v2729
          %2797 = vmatpush.bf16.msra.mxu0 %v2728
          %2798 = vmatpush.bf16.msra.mxu0 %v2727
          %2799 = vmatmul.bf16.gmra.mxu0 %v2591
          %v2800 = vpop.f32.mrf.mxu0
          %v2801 = vadd.f32 %v2583, %v2800
          %v2802 = vpop.f32.mrf.mxu0
          %2803 = vdwg.mxu0
          %2804 = vmatpush.bf16.msra.mxu0 %v2742
          %2805 = vmatpush.bf16.msra.mxu0 %v2741
          %2806 = vmatpush.bf16.msra.mxu0 %v2740
          %2807 = vmatpush.bf16.msra.mxu0 %v2739
          %2808 = vmatpush.bf16.msra.mxu0 %v2738
          %2809 = vmatpush.bf16.msra.mxu0 %v2737
          %2810 = vmatpush.bf16.msra.mxu0 %v2736
          %2811 = vmatpush.bf16.msra.mxu0 %v2735
          %2812 = vmatmul.bf16.gmra.mxu0 %v2592
          %v2813 = vpop.f32.mrf.mxu0
          %v2814 = vadd.f32 %v2801, %v2813
          %v2815 = vpop.f32.mrf.mxu0
          %2816 = vdwg.mxu0
          %2817 = vmatpush.bf16.msra.mxu0 %v2750
          %2818 = vmatpush.bf16.msra.mxu0 %v2749
          %2819 = vmatpush.bf16.msra.mxu0 %v2748
          %2820 = vmatpush.bf16.msra.mxu0 %v2747
          %2821 = vmatpush.bf16.msra.mxu0 %v2746
          %2822 = vmatpush.bf16.msra.mxu0 %v2745
          %2823 = vmatpush.bf16.msra.mxu0 %v2744
          %2824 = vmatpush.bf16.msra.mxu0 %v2743
          %2825 = vmatmul.bf16.gmra.mxu0 %v2593
          %v2826 = vpop.f32.mrf.mxu0
          %v2827 = vadd.f32 %v2814, %v2826
          %v2828 = vpop.f32.mrf.mxu0
          %2829 = vdwg.mxu0
          %2830 = vmatpush.bf16.msra.mxu0 %v2758
          %2831 = vmatpush.bf16.msra.mxu0 %v2757
          %2832 = vmatpush.bf16.msra.mxu0 %v2756
          %2833 = vmatpush.bf16.msra.mxu0 %v2755
          %2834 = vmatpush.bf16.msra.mxu0 %v2754
          %2835 = vmatpush.bf16.msra.mxu0 %v2753
          %2836 = vmatpush.bf16.msra.mxu0 %v2752
          %2837 = vmatpush.bf16.msra.mxu0 %v2751
          %2838 = vmatmul.bf16.gmra.mxu0 %v2594
          %v2839 = vpop.f32.mrf.mxu0
          %v2840 = vadd.f32 %v2827, %v2839
          %v2841 = vpop.f32.mrf.mxu0
          %2842 = vdwg.mxu0
          %2843 = vst [vmem:[%s734] sm:$0xff] %v2840
        $region124: #{tpu_custom_call.1} parent=71 // pred_fallthru
          _
        %s2844 = sand.u32 %s42, 1
        %s2845 = scalar_lea.sflag [#allocation21], %s2844
        %s2846 = sand.u32 %s394, 1
        %s2847 = smul.addr %s2846, 8
        %s2848 = scalar_lea.vmem [#allocation20], %s2847
        // Predicated region
        $region125: #{tpu_custom_call.1} parent=71 // pred_check
          %p2849 = pneg %p376
        $region126: #{tpu_custom_call.1} parent=71 // pred_check_branch
          %2851 = sbr.rel (%p2849) target = $region128
        $region127: #{tpu_custom_call.1} parent=71 // pred_region
          %2853 = vsyncadd [#allocation6], 0
          %s2855 = sshll.u32 [#allocation19], 4
          %s2856 = int_to_ptr.vmem [resolvable:$true] %s2855
          %s2857 = sshll.u32 %s13, 4
          %s2858 = int_to_ptr.hbm [resolvable:$true] %s2857
          %2860 = dma.vmem_to_hbm [thread:$0]  %s2856, 128, %s2858, [#allocation6]
        $region128: #{tpu_custom_call.1} parent=71 // pred_fallthru
          _
        // Predicated region
        $region129: #{tpu_custom_call.1} parent=71 // pred_check
          %p2861 = pneg %p404
        $region130: #{tpu_custom_call.1} parent=71 // pred_check_branch
          %2863 = sbr.rel (%p2861) target = $region132
        $region131: #{tpu_custom_call.1} parent=71 // pred_region
          %s2864 = smul.u32 %s47, %s46
          %2866 = vsyncadd %s2845, 0
          %s2867 = smul.addr %s2864, 8
          %s2868 = scalar_lea.hbm %s14, %s2867
          %s2870 = sshll.u32 %s2848, 4
          %s2871 = int_to_ptr.vmem [resolvable:$true] %s2870
          %s2872 = sshll.u32 %s2868, 4
          %s2873 = int_to_ptr.hbm [resolvable:$true] %s2872
          %2875 = dma.vmem_to_hbm [thread:$0]  %s2871, 128, %s2873, %s2845
        $region132: #{tpu_custom_call.1} parent=71 // pred_fallthru
          _
        // Predicated region
        $region133: #{tpu_custom_call.1} parent=71 // pred_check
          %p2876 = pneg %p425
        $region134: #{tpu_custom_call.1} parent=71 // pred_check_branch
          %2878 = sbr.rel (%p2876) target = $region136
        $region135: #{tpu_custom_call.1} parent=71 // pred_region
          %2880 = vsyncadd [#allocation21], 0
          %s2882 = sshll.u32 [#allocation22], 4
          %s2883 = int_to_ptr.vmem [resolvable:$true] %s2882
          %s2884 = sshll.u32 %s15, 4
          %s2885 = int_to_ptr.hbm [resolvable:$true] %s2884
          %2887 = dma.vmem_to_hbm [thread:$0]  %s2883, 256, %s2885, [#allocation21]
        $region136: #{tpu_custom_call.1} parent=71 // pred_fallthru
          _
        // Predicated region
        $region137: #{tpu_custom_call.1} parent=71 // pred_check
          %p2888 = pneg %p376
        $region138: #{tpu_custom_call.1} parent=71 // pred_check_branch
          %2890 = sbr.rel (%p2888) target = $region140
        $region139: #{tpu_custom_call.1} parent=71 // pred_region
          %2892 = dma.done [#allocation6], 128
        $region140: #{tpu_custom_call.1} parent=71 // pred_fallthru
          _
        // Predicated region
        $region141: #{tpu_custom_call.1} parent=71 // pred_check
          %p2893 = pneg %p425
        $region142: #{tpu_custom_call.1} parent=71 // pred_check_branch
          %2895 = sbr.rel (%p2893) target = $region144
        $region143: #{tpu_custom_call.1} parent=71 // pred_region
          %2897 = dma.done [#allocation21], 256
        $region144: #{tpu_custom_call.1} parent=71 // pred_fallthru
          _
      $region72: #{tpu_custom_call.1} parent=5 // pred_fallthru
        _
      %p2898 = scmp.le.s32.totalorder 2, %s37
      // Predicated region
      $region145: #{tpu_custom_call.1} parent=5 // pred_check
        %p2899 = pneg %p2898
      $region146: #{tpu_custom_call.1} parent=5 // pred_check_branch
        %2901 = sbr.rel (%p2899) target = $region148
      $region147: #{tpu_custom_call.1} parent=5 // pred_region
        %s2902 = ssub.s32 %s37, 2
        // Predicated region
        $region149: #{tpu_custom_call.1} parent=147 // pred_check
          %p2903 = pneg %p410
        $region150: #{tpu_custom_call.1} parent=147 // pred_check_branch
          %2905 = sbr.rel (%p2903) target = $region152
        $region151: #{tpu_custom_call.1} parent=147 // pred_region
          %s2906 = sand.u32 %s43, 1
          %s2907 = scalar_lea.sflag [#allocation21], %s2906
          %s2908 = sand.u32 %s395, 1
          %s2909 = smul.addr %s2908, 8
          %s2910 = scalar_lea.vmem [#allocation20], %s2909
          %2912 = dma.done %s2907, 128
        $region152: #{tpu_custom_call.1} parent=147 // pred_fallthru
          _
      $region148: #{tpu_custom_call.1} parent=5 // pred_fallthru
        _
    $region6: #{tpu_custom_call.1} parent=1 // loop_footer
      %s41 = sadd.s32 1, %s37
    $region7: #{tpu_custom_call.1} parent=1 // loop_footer_branch
      %36 = sbr.rel target = $region3
    $region8: #{tpu_custom_call.1} parent=1 // loop_exit
      _
    %2913 = vsyncpa [#allocation5], 1
    %s2914 = scalar_lea.sflag [#allocation5], 1
    %2915 = vsyncpa %s2914, 1
    %2916 = vsyncpa [#allocation8], 1
    %s2917 = scalar_lea.sflag [#allocation8], 1
    %2918 = vsyncpa %s2917, 1
    %2919 = vsyncpa [#allocation11], 1
    %2920 = vsyncpa [#allocation14], 1
    %2921 = vsyncpa [#allocation17], 1
    %s2922 = scalar_lea.sflag [#allocation17], 1
    %2923 = vsyncpa %s2922, 1
    %2924 = vsyncpa [#allocation6], 1
    %s2925 = scalar_lea.sflag [#allocation6], 1
    %2926 = vsyncpa %s2925, 1
    %2927 = vsyncpa [#allocation21], 1
    %s2928 = scalar_lea.sflag [#allocation21], 1
    %2929 = vsyncpa %s2928, 1

</llo_original>
